<compile_context>
chip_gen: v6e
topology: v6e:2x2x1
jax: 0.10.0
libtpu: 0.0.40
codegen_flags: <defaults>
</compile_context>

<pallas_src>
import math
import functools

import jax
import jax.numpy as jnp
from jax import lax
from jax.experimental import pallas as pl
from jax.experimental.pallas import tpu as pltpu


_NEG_INF = -1e30  # large finite negative: avoids NaN from (-inf) - (-inf)
_VMEM_LIMIT = 32 * 1024 * 1024


def _pick_tile(dim, target, granule=128):
    """Largest multiple of `granule` that divides `dim` and is <= target.
    Falls back to the full dim (always a legal block) when no such tile exists."""
    if dim <= target:
        return dim
    best = None
    cand = granule
    while cand <= target:
        if dim % cand == 0:
            best = cand
        cand += granule
    return best if best is not None else dim


def _pick_head_group(n_head, head_size):
    """Smallest group of heads G (G | n_head) whose packed width G*head_size is a multiple
    of 128 lanes; prefer >= 256 lanes for efficient DMA chunks. None if impossible."""
    best = None
    for g in range(1, n_head + 1):
        if n_head % g:
            continue
        width = g * head_size
        if width % 128:
            continue
        if best is None:
            best = g
        if width >= 256:
            return g
    return best


# ----------------------------------------------------------------------------
# Tiled linear kernel:  y = x @ w_t (+ bias)    (w_t already transposed on host)
# ----------------------------------------------------------------------------
def _linear(x, w_t, bias=None, *, out_dtype=None, bm=512, bn=512, bk=1024):
    """x: (M, K), w_t: (K, N), bias: (1, N) f32 or None -> (M, N) out_dtype."""
    M, K = x.shape
    K2, N = w_t.shape
    assert K == K2
    out_dtype = x.dtype if out_dtype is None else out_dtype
    bm = _pick_tile(M, bm)
    bn = _pick_tile(N, bn)
    bk = _pick_tile(K, min(K, bk))
    nk = K // bk
    has_bias = bias is not None
    single_k = nk == 1

    def kernel(*refs):
        if has_bias:
            x_ref, w_ref, b_ref = refs[:3]
            rest = refs[3:]
        else:
            x_ref, w_ref = refs[:2]
            b_ref = None
            rest = refs[2:]
        if single_k:
            (o_ref,) = rest
            acc = jnp.dot(x_ref[...], w_ref[...], preferred_element_type=jnp.float32)
            if b_ref is not None:
                acc = acc + b_ref[...]
            o_ref[...] = acc.astype(o_ref.dtype)
        else:
            o_ref, acc_ref = rest

            @pl.when(pl.program_id(2) == 0)
            def _():
                acc_ref[...] = jnp.zeros_like(acc_ref)

            acc_ref[...] += jnp.dot(x_ref[...], w_ref[...],
                                    preferred_element_type=jnp.float32)

            @pl.when(pl.program_id(2) == nk - 1)
            def _():
                acc = acc_ref[...]
                if b_ref is not None:
                    acc = acc + b_ref[...]
                o_ref[...] = acc.astype(o_ref.dtype)

    in_specs = [
        pl.BlockSpec((bm, bk), lambda i, j, k: (i, k)),
        pl.BlockSpec((bk, bn), lambda i, j, k: (k, j)),
    ]
    operands = [x, w_t]
    if has_bias:
        in_specs.append(pl.BlockSpec((1, bn), lambda i, j, k: (0, j)))
        operands.append(bias)

    return pl.pallas_call(
        kernel,
        out_shape=jax.ShapeDtypeStruct((M, N), out_dtype),
        grid_spec=pltpu.PrefetchScalarGridSpec(
            num_scalar_prefetch=0,
            grid=(M // bm, N // bn, nk),
            in_specs=in_specs,
            out_specs=pl.BlockSpec((bm, bn), lambda i, j, k: (i, j)),
            scratch_shapes=[] if single_k else [pltpu.VMEM((bm, bn), jnp.float32)],
        ),
        compiler_params=pltpu.CompilerParams(
            dimension_semantics=("parallel", "parallel", "arbitrary"),
            vmem_limit_bytes=_VMEM_LIMIT),
    )(*operands)


# ----------------------------------------------------------------------------
# Flash-style causal attention kernel (online softmax, packed head groups)
# ----------------------------------------------------------------------------
def _flash_kernel(q_ref, k_ref, v_ref, o_ref, m_sc, l_sc, acc_sc,
                  *, block_q, block_kv, heads_per_block, head_size):
    # q_ref: (bq, G*hs)  k_ref/v_ref: (bkv, G*hs)  o_ref: (bq, G*hs)
    # scratch: m/l (G, bq, 1) f32, acc (G, bq, hs) f32
    qi = pl.program_id(2)
    ki = pl.program_id(3)
    q_start = qi * block_q
    kv_start = ki * block_kv
    last_ki = (q_start + block_q - 1) // block_kv   # last kv tile with visible keys

    @pl.when(ki == 0)
    def _():
        m_sc[...] = jnp.full_like(m_sc, _NEG_INF)
        l_sc[...] = jnp.zeros_like(l_sc)
        acc_sc[...] = jnp.zeros_like(acc_sc)

    def update(apply_mask):
        if apply_mask:
            row = q_start + lax.broadcasted_iota(jnp.int32, (block_q, block_kv), 0)
            col = kv_start + lax.broadcasted_iota(jnp.int32, (block_q, block_kv), 1)
            visible = row >= col
        for h in range(heads_per_block):            # static unroll over packed heads
            lo, hi = h * head_size, (h + 1) * head_size
            q_h = q_ref[:, lo:hi]                   # (bq, hs)  (scale pre-folded into W_q)
            k_h = k_ref[:, lo:hi]                   # (bkv, hs)
            # scores = q @ k^T: contract last dims, no in-kernel transpose.
            s = lax.dot_general(q_h, k_h, (((1,), (1,)), ((), ())),
                                preferred_element_type=jnp.float32)   # (bq, bkv) f32
            if apply_mask:
                s = jnp.where(visible, s, _NEG_INF)
            m_prev = m_sc[h]
            m_new = jnp.maximum(m_prev, jnp.max(s, axis=-1, keepdims=True))
            alpha = jnp.exp(m_prev - m_new)                            # (bq, 1)
            p = jnp.exp(s - m_new)                                     # (bq, bkv) f32
            l_sc[h] = alpha * l_sc[h] + jnp.sum(p, axis=-1, keepdims=True)
            acc_sc[h] = alpha * acc_sc[h] + jnp.dot(
                p.astype(v_ref.dtype), v_ref[:, lo:hi],
                preferred_element_type=jnp.float32)
            m_sc[h] = m_new

    # Interior kv tiles: every key visible to every query row -> mask-free fast path.
    @pl.when(kv_start + block_kv - 1 <= q_start)
    def _():
        update(False)

    # Diagonal-straddling kv tiles: apply the causal mask.
    @pl.when(jnp.logical_and(kv_start + block_kv - 1 > q_start,
                             kv_start <= q_start + block_q - 1))
    def _():
        update(True)

    # Finalize on the last visible kv tile (fully-masked tiles do no work at all).
    @pl.when(ki == last_ki)
    def _():
        for h in range(heads_per_block):
            inv_l = 1.0 / l_sc[h]                                      # exact, epilogue only
            o_ref[:, h * head_size:(h + 1) * head_size] = (
                acc_sc[h] * inv_l).astype(o_ref.dtype)


def _flash_attention(qkv, *, n_head, head_size, block_q=128, block_kv=128):
    """Causal self-attention on a fused QKV slab.

    qkv: (B, T, 3C) laid out as [q(C) | k(C) | v(C)] with C = n_head*head_size,
         heads contiguous inside each C chunk.  Returns (B, T, C).
    """
    B, T, C3 = qkv.shape
    C = C3 // 3
    assert C == n_head * head_size
    G = _pick_head_group(n_head, head_size)
    if G is None:
        # TODO(synk): add a fallback path for head sizes that cannot form a 128-lane group.
        raise ValueError(
            f"n_head={n_head}, head_size={head_size}: no head group with a 128-lane "
            f"aligned packed width; unsupported by this kernel.")
    NG = n_head // G          # number of head groups (grid axis)
    gw = G * head_size        # packed group width in lanes (multiple of 128)

    block_q = _pick_tile(T, block_q)
    block_kv = _pick_tile(T, block_kv)
    grid = (B, NG, T // block_q, T // block_kv)

    def kv_block(qi, ki):
        # Clamp skipped (fully-masked) kv tiles to the last in-range tile so Pallas does
        # not issue a new K/V DMA for them (compute is skipped in-kernel anyway).
        return jnp.minimum(ki, (qi * block_q + block_q - 1) // block_kv)

    kernel = functools.partial(_flash_kernel, block_q=block_q, block_kv=block_kv,
                               heads_per_block=G, head_size=head_size)

    return pl.pallas_call(
        kernel,
        out_shape=jax.ShapeDtypeStruct((B, T, C), qkv.dtype),
        grid_spec=pltpu.PrefetchScalarGridSpec(
            num_scalar_prefetch=0,
            grid=grid,
            in_specs=[
                # q group g lives in channel block g of the 3C axis.
                pl.BlockSpec((None, block_q, gw),
                             lambda b, g, qi, ki: (b, qi, g)),
                # k group g lives at channel block NG + g.
                pl.BlockSpec((None, block_kv, gw),
                             lambda b, g, qi, ki: (b, kv_block(qi, ki), NG + g)),
                # v group g lives at channel block 2*NG + g.
                pl.BlockSpec((None, block_kv, gw),
                             lambda b, g, qi, ki: (b, kv_block(qi, ki), 2 * NG + g)),
            ],
            out_specs=pl.BlockSpec((None, block_q, gw),
                                   lambda b, g, qi, ki: (b, qi, g)),
            scratch_shapes=[
                pltpu.VMEM((G, block_q, 1), jnp.float32),          # running max
                pltpu.VMEM((G, block_q, 1), jnp.float32),          # running denominator
                pltpu.VMEM((G, block_q, head_size), jnp.float32),  # output accumulator
            ],
        ),
        compiler_params=pltpu.CompilerParams(
            dimension_semantics=("parallel", "parallel", "parallel", "arbitrary"),
            vmem_limit_bytes=_VMEM_LIMIT),
    )(qkv, qkv, qkv)


# ----------------------------------------------------------------------------
# Parameter preparation (done once, not per forward call)
# ----------------------------------------------------------------------------
def prepare_mha_params(w_attn, w_proj, b_proj, *, n_head, compute_dtype=jnp.bfloat16):
    """Pre-transpose / cast weights once and fold the softmax scale into W_q (f32).

    w_attn: (3C, C) PyTorch Linear layout (out_features, in_features), bias=False
    w_proj: (C, C)  PyTorch Linear layout
    b_proj: (C,)
    """
    C = w_proj.shape[0]
    assert C % n_head == 0
    head_size = C // n_head
    scale = 1.0 / math.sqrt(head_size)

    w_attn_t = w_attn.astype(jnp.float32).T                  # (C, 3C)
    w_attn_t = w_attn_t.at[:, :C].multiply(scale)            # fold 1/sqrt(hs) into Q cols
    return dict(
        w_attn_t=w_attn_t.astype(compute_dtype),             # (C, 3C)
        w_proj_t=w_proj.astype(jnp.float32).T.astype(compute_dtype),  # (C, C)
        b_proj=b_proj.reshape(1, C).astype(jnp.float32),      # (1, C)
        n_head=n_head,
        compute_dtype=compute_dtype,
    )


# ----------------------------------------------------------------------------
# Full module forward
# ----------------------------------------------------------------------------
def multi_head_attention(x, params, *, block_q=128, block_kv=128):
    """Forward of the PyTorch MultiHeadAttention module (eval mode).

    x: (B, T, C).  params: output of prepare_mha_params.
    MXU operands use params['compute_dtype']; accumulation / softmax are f32.
    """
    B, T, C = x.shape
    n_head = params["n_head"]
    head_size = C // n_head
    cdt = params["compute_dtype"]

    # 1) QKV projection (c_attn, bias=False).
    x2d = x.reshape(B * T, C).astype(cdt)
    qkv = _linear(x2d, params["w_attn_t"], bias=None, out_dtype=cdt)   # (B*T, 3C)
    qkv = qkv.reshape(B, T, 3 * C)                                     # free reshape

    # 2) Flash-style causal attention; head split/merge fused into the BlockSpecs,
    #    output comes back directly as a (B, T, C) slab.
    attn = _flash_attention(qkv, n_head=n_head, head_size=head_size,
                            block_q=block_q, block_kv=block_kv)

    # 3) Output projection (c_proj, with bias).
    proj = _linear(attn.reshape(B * T, C), params["w_proj_t"],
                   bias=params["b_proj"], out_dtype=x.dtype)
    # TODO(synk): attention dropout (training mode) not implemented; eval mode is a no-op.
    return proj.reshape(B, T, C)


# ----------------------------------------------------------------------------
# Pure-JAX reference (matches the PyTorch forward in eval mode)
# ----------------------------------------------------------------------------
def _reference(x, w_attn, w_proj, b_proj, n_head):
    B, T, C = x.shape
    hs = C // n_head
    qkv = x @ w_attn.T                                               # (B, T, 3C)
    q, k, v = jnp.split(qkv, 3, axis=2)

    def heads(t):
        return t.reshape(B, T, n_head, hs).transpose(0, 2, 1, 3)     # (B, H, T, hs)

    q, k, v = heads(q), heads(k), heads(v)
    scores = jnp.einsum("bhqd,bhkd->bhqk", q, k) / math.sqrt(hs)
    mask = jnp.tril(jnp.ones((T, T), dtype=bool))
    scores = jnp.where(mask, scores, -jnp.inf)
    attn = jax.nn.softmax(scores, axis=-1)
    out = jnp.einsum("bhqk,bhkd->bhqd", attn, v)
    out = out.transpose(0, 2, 1, 3).reshape(B, T, C)
    return out @ w_proj.T + b_proj


if __name__ == "__main__":
    # Small nano-GPT-like config: B=2, T=256, n_embd=256, n_head=4 (head_size=64).
    B, T, C, n_head = 2, 256, 256, 4
    key = jax.random.PRNGKey(0)
    kx, k1, k2, k3 = jax.random.split(key, 4)

    x = jax.random.normal(kx, (B, T, C), dtype=jnp.float32)
    # PyTorch Linear layout: (out_features, in_features)
    w_attn = jax.random.normal(k1, (3 * C, C), dtype=jnp.float32) * 0.05
    w_proj = jax.random.normal(k2, (C, C), dtype=jnp.float32) * 0.05
    b_proj = jax.random.normal(k3, (C,), dtype=jnp.float32) * 0.05

    ref = _reference(x, w_attn, w_proj, b_proj, n_head)

    # Exact path: f32 MXU operands.
    params_f32 = prepare_mha_params(w_attn, w_proj, b_proj, n_head=n_head,
                                    compute_dtype=jnp.float32)
    out = jax.block_until_ready(multi_head_attention(x, params_f32))
    assert out.shape == (B, T, C)
    assert jnp.allclose(out, ref, atol=2e-3, rtol=2e-3), \
        f"f32 max err {jnp.max(jnp.abs(out - ref))}"

    # Production path: bf16 MXU operands (default), f32 accumulation.
    params_bf16 = prepare_mha_params(w_attn, w_proj, b_proj, n_head=n_head)
    out_bf16 = jax.block_until_ready(multi_head_attention(x, params_bf16))
    out_bf16 = out_bf16.astype(jnp.float32)
    assert jnp.allclose(out_bf16, ref, atol=1e-1, rtol=1e-1), \
        f"bf16 max err {jnp.max(jnp.abs(out_bf16 - ref))}"

    print("KERNEL_OK")
</pallas_src>

<mosaic_0001>
module attributes {stable_mosaic.version = 11 : i64} {
  func.func @kernel(%arg0: i32, %arg1: i32, %arg2: i32, %arg3: memref<512x256xf32, #tpu.memory_space<vmem>>, %arg4: memref<256x384xf32, #tpu.memory_space<vmem>>, %arg5: memref<512x384xf32, #tpu.memory_space<vmem>>) attributes {dimension_semantics = [#tpu.dimension_semantics<parallel>, #tpu.dimension_semantics<parallel>, #tpu.dimension_semantics<arbitrary>], iteration_bounds = array<i64: 1, 2, 1>, scalar_prefetch = 0 : i64, scratch_operands = 0 : i64, tpu.core_type = #tpu.core_type<tc>, window_params = [{transform_indices = @transform_0, window_bounds = array<i64: 512, 256>}, {transform_indices = @transform_1, window_bounds = array<i64: 256, 384>}, {transform_indices = @transform_2, window_bounds = array<i64: 512, 384>}]} {
    %c0 = arith.constant 0 : index
    %c0_0 = arith.constant 0 : index
    %0 = vector.load %arg3[%c0, %c0_0] : memref<512x256xf32, #tpu.memory_space<vmem>>, vector<512x256xf32>
    %c0_1 = arith.constant 0 : index
    %c0_2 = arith.constant 0 : index
    %1 = vector.load %arg4[%c0_1, %c0_2] : memref<256x384xf32, #tpu.memory_space<vmem>>, vector<256x384xf32>
    %cst = arith.constant dense<0.000000e+00> : vector<512x384xf32>
    %2 = tpu.matmul %0, %1, %cst {dimension_numbers = #tpu.dot_dimension_numbers<[1], [0], [0], [1], [0, 0, 1, 1], [], []>} : vector<512x256xf32>, vector<256x384xf32>, vector<512x384xf32> -> vector<512x384xf32>
    %c0_3 = arith.constant 0 : index
    %c0_4 = arith.constant 0 : index
    %3 = vector.load %arg5[%c0_3, %c0_4] : memref<512x384xf32, #tpu.memory_space<vmem>>, vector<512x384xf32>
    tpu.vector_store %arg5[%c0_3, %c0_4], %2 {strides = array<i32>} : memref<512x384xf32, #tpu.memory_space<vmem>>, vector<512x384xf32>,
    return
  }
  func.func @transform_0(%arg0: i32, %arg1: i32, %arg2: i32) -> (i32, i32) {
    %c0_i32 = arith.constant 0 : i32
    return %arg0, %arg2 : i32, i32
  }
  func.func @transform_1(%arg0: i32, %arg1: i32, %arg2: i32) -> (i32, i32) {
    %c0_i32 = arith.constant 0 : i32
    return %arg2, %arg1 : i32, i32
  }
  func.func @transform_2(%arg0: i32, %arg1: i32, %arg2: i32) -> (i32, i32) {
    %c0_i32 = arith.constant 0 : i32
    return %arg0, %arg1 : i32, i32
  }
}

</mosaic_0001>

<llo_original>
// kernel: tpu_custom_call.1
$region0: #{tpu_custom_call.1}
  #allocation0 [shape = 'u32[]', space=smem, size = 0x4, offset = 0x4, fixed_abs, tag = 'smem constant byte address 0x4 - core index']
  #allocation1 [shape = 'u32[144,128]{1,0:T(1,128)}', space=vmem, size = 0x12000, scoped, tag = 'internal scratch']
  %s0 = inlined_call_operand.hbm [shape: f32[512,256], index: 0, kind: input, shape index: {}]
  %s1 = inlined_call_operand.hbm [shape: f32[256,768], index: 1, kind: input, shape index: {}]
  %s2 = inlined_call_operand.hbm [shape: f32[512,768], index: 2, kind: output, shape index: {}]
  %s3 = sld [smem:[#allocation0]]
  $region49: #{tpu_custom_call.1} parent=0
    _
  %s5 = ssub.s32 1, %s3
  %s6 = scalar_select 0, %s5, %s3
  $region1: #{tpu_custom_call.1} parent=0
    #allocation2 [shape = 'u8[524288]{0}', space=vmem, size = 0x80000, scoped, tag = 'input window, operand 0, single buffered']
    #allocation3 [shape = 's32[2]{0}', space=sflag, size = 0x8, scoped, tag = 'scoped memory for tpu_custom_call.1']
    #allocation4 [shape = 's32[2]{0}', space=sflag, size = 0x8, scoped, tag = 'scoped memory for tpu_custom_call.1']
    #allocation5 [shape = 'u8[786432]{0}', space=vmem, size = 0xc0000, scoped, tag = 'input window, operand 1']
    #allocation6 [shape = 's32[2]{0}', space=sflag, size = 0x8, scoped, tag = 'scoped memory for tpu_custom_call.1']
    #allocation7 [shape = 'u8[1572864]{0}', space=vmem, size = 0x180000, scoped, tag = 'output window, operand 0']
    %7 = vsyncpa [#allocation3], 0
    %8 = vsyncpa [#allocation6], 0
    %s9 = scalar_lea.sflag [#allocation6], 1
    %10 = vsyncpa %s9, 0
    %11 = vsyncpa [#allocation4], 0
    %s12 = scalar_lea.sflag [#allocation4], 1
    %13 = vsyncpa %s12, 0
    loop: start=0, step=1, limit=4
    $region2: #{tpu_custom_call.1} parent=1 // loop_pre_header
      _
    $region3: #{tpu_custom_call.1} parent=1 // loop_header
      %s15 = sphi 0, %s19
      %p16 = scmp.ge.s32.totalorder %s15, 4
      %s22 = sphi 0, %s41
      %s23 = sphi 0, %s37
      %s24 = sphi 0, %s33
      %s25 = sphi 0, %s22
      %s26 = sphi 0, %s23
      %s27 = sphi 0, %s24
      %s28 = sphi 0, %s25
      %s29 = sphi 0, %s26
      %s30 = sphi 0, %s27
      %s46 = sphi 0, %s48
      %s49 = sphi 0, %s46
      %s50 = sphi 0, %s49
      %s66 = sphi 0, %s50
      %s74 = sphi 0, %s76
      %s77 = sphi 0, %s74
      %s78 = sphi 0, %s77
      %s94 = sphi 0, %s78
      %s102 = sphi 0, %s104
      %s105 = sphi 0, %s102
      %s106 = sphi 0, %s105
      %s122 = sphi 0, %s106
    $region4: #{tpu_custom_call.1} parent=1 // loop_header_branch
      %18 = sbr.rel (%p16) target = $region8
    $region5: #{tpu_custom_call.1} parent=1 // loop_body
      %s20 = ssub.s32 %s15, 1
      %s21 = ssub.s32 %s15, 2
      %s31 = sadd.s32 1, %s24
      %p32 = scmp.ge.s32.totalorder %s31, 1
      %s33 = scalar_select %p32, 0, %s31
      %s34 = sadd.s32 1, %s23
      %s35 = scalar_select %p32, %s34, %s23
      %p36 = scmp.ge.s32.totalorder %s35, 2
      %s37 = scalar_select %p36, 0, %s35
      %s38 = sadd.s32 1, %s22
      %s39 = scalar_select %p36, %s38, %s22
      %p40 = scmp.ge.s32.totalorder %s39, 1
      %s41 = scalar_select %p40, 0, %s39
      %s42 = ssub.s32 %s22, %s41
      %s43 = ssub.s32 %s24, %s33
      %s44 = sor.u32 %s42, %s43
      %p45 = scmp.eq.s32.totalorder %s44, 0
      %s47 = sadd.s32 %s46, 1
      %s48 = scalar_select %p45, %s46, %s47
      %p51 = pneg %p45
      %p52 = scmp.eq.s32.totalorder %s15, 1
      %p53 = por %p51, %p52
      %p54 = scmp.ne.s32.totalorder %s46, %s49
      %p55 = scmp.eq.s32.totalorder %s15, 0
      %p56 = por %p54, %p55
      %p57 = scmp.ne.s32.totalorder %s46, %s49
      %p58 = scmp.eq.s32.totalorder %s20, 1
      %p59 = por %p57, %p58
      %p60 = scmp.ne.s32.totalorder %s49, %s50
      %p61 = scmp.eq.s32.totalorder %s20, 0
      %p62 = por %p60, %p61
      %p63 = scmp.ne.s32.totalorder %s49, %s50
      %p64 = scmp.eq.s32.totalorder %s21, 1
      %p65 = por %p63, %p64
      %p67 = scmp.ne.s32.totalorder %s50, %s66
      %p68 = scmp.eq.s32.totalorder %s21, 0
      %p69 = por %p67, %p68
      %s70 = ssub.s32 %s24, %s33
      %s71 = ssub.s32 %s23, %s37
      %s72 = sor.u32 %s70, %s71
      %p73 = scmp.eq.s32.totalorder %s72, 0
      %s75 = sadd.s32 %s74, 1
      %s76 = scalar_select %p73, %s74, %s75
      %p79 = pneg %p73
      %p80 = scmp.eq.s32.totalorder %s15, 1
      %p81 = por %p79, %p80
      %p82 = scmp.ne.s32.totalorder %s74, %s77
      %p83 = scmp.eq.s32.totalorder %s15, 0
      %p84 = por %p82, %p83
      %p85 = scmp.ne.s32.totalorder %s74, %s77
      %p86 = scmp.eq.s32.totalorder %s20, 1
      %p87 = por %p85, %p86
      %p88 = scmp.ne.s32.totalorder %s77, %s78
      %p89 = scmp.eq.s32.totalorder %s20, 0
      %p90 = por %p88, %p89
      %p91 = scmp.ne.s32.totalorder %s77, %s78
      %p92 = scmp.eq.s32.totalorder %s21, 1
      %p93 = por %p91, %p92
      %p95 = scmp.ne.s32.totalorder %s78, %s94
      %p96 = scmp.eq.s32.totalorder %s21, 0
      %p97 = por %p95, %p96
      %s98 = ssub.s32 %s22, %s41
      %s99 = ssub.s32 %s23, %s37
      %s100 = sor.u32 %s98, %s99
      %p101 = scmp.eq.s32.totalorder %s100, 0
      %s103 = sadd.s32 %s102, 1
      %s104 = scalar_select %p101, %s102, %s103
      %p107 = pneg %p101
      %p108 = scmp.eq.s32.totalorder %s15, 1
      %p109 = por %p107, %p108
      %p110 = scmp.ne.s32.totalorder %s102, %s105
      %p111 = scmp.eq.s32.totalorder %s15, 0
      %p112 = por %p110, %p111
      %p113 = scmp.ne.s32.totalorder %s102, %s105
      %p114 = scmp.eq.s32.totalorder %s20, 1
      %p115 = por %p113, %p114
      %p116 = scmp.ne.s32.totalorder %s105, %s106
      %p117 = scmp.eq.s32.totalorder %s20, 0
      %p118 = por %p116, %p117
      %p119 = scmp.ne.s32.totalorder %s105, %s106
      %p120 = scmp.eq.s32.totalorder %s21, 1
      %p121 = por %p119, %p120
      %p123 = scmp.ne.s32.totalorder %s106, %s122
      %p124 = scmp.eq.s32.totalorder %s21, 0
      %p125 = por %p123, %p124
      %p126 = scmp.le.s32.totalorder 1, %s15
      %p127 = scmp.lt.s32.totalorder %s15, 3
      %p128 = pnand %p126, %p127
      %p129 = pneg %p128
      // Predicated region
      $region9: #{tpu_custom_call.1} parent=5 // pred_check
        _
      $region10: #{tpu_custom_call.1} parent=5 // pred_check_branch
        %131 = sbr.rel (%p128) target = $region12
      $region11: #{tpu_custom_call.1} parent=5 // pred_region
        %s132 = ssub.s32 %s15, 1
        // Predicated region
        $region13: #{tpu_custom_call.1} parent=11 // pred_check
          %p133 = pneg %p62
        $region14: #{tpu_custom_call.1} parent=11 // pred_check_branch
          %135 = sbr.rel (%p133) target = $region16
        $region15: #{tpu_custom_call.1} parent=11 // pred_region
          %s136 = smul.u32 64, %s25
          %s137 = smul.u32 2, %s27
          %s139 = ssub.s32 16384, 16384
          %140 = vsyncadd [#allocation3], %s139
          %s141 = smul.addr %s136, 2
          %s142 = sadd.s32 %s137, %s141
          %s143 = smul.addr %s142, 128
          %s144 = scalar_lea.hbm %s0, %s143
          %s145 = sshll.u32 [#allocation2], 4
          %s146 = int_to_ptr.vmem [resolvable:$true] %s145
          %151 = dma.hbm_to_vmem [thread:$0]  %s144, 16384, %s146, [#allocation3], 256, 256, 16
        $region16: #{tpu_custom_call.1} parent=11 // pred_fallthru
          _
      $region12: #{tpu_custom_call.1} parent=5 // pred_fallthru
        _
      %p152 = scmp.lt.s32.totalorder %s15, 2
      // Predicated region
      $region17: #{tpu_custom_call.1} parent=5 // pred_check
        %p153 = pneg %p152
      $region18: #{tpu_custom_call.1} parent=5 // pred_check_branch
        %155 = sbr.rel (%p153) target = $region20
      $region19: #{tpu_custom_call.1} parent=5 // pred_region
        // Predicated region
        $region21: #{tpu_custom_call.1} parent=19 // pred_check
          %p156 = pneg %p84
        $region22: #{tpu_custom_call.1} parent=19 // pred_check_branch
          %158 = sbr.rel (%p156) target = $region24
        $region23: #{tpu_custom_call.1} parent=19 // pred_region
          %s159 = sand.u32 %s74, 1
          %s160 = scalar_lea.sflag [#allocation6], %s159
          %s161 = sand.u32 %s74, 1
          %s162 = smul.addr %s161, 768
          %s163 = scalar_lea.vmem [#allocation5], %s162
          %s164 = smul.u32 32, %s24
          %s165 = smul.u32 3, %s23
          %s167 = ssub.s32 12288, 12288
          %168 = vsyncadd %s160, %s167
          %s169 = smul.addr %s164, 6
          %s170 = sadd.s32 %s165, %s169
          %s171 = smul.addr %s170, 128
          %s172 = scalar_lea.hbm %s1, %s171
          %s173 = sshll.u32 %s163, 4
          %s174 = int_to_ptr.vmem [resolvable:$true] %s173
          %179 = dma.hbm_to_vmem [thread:$0]  %s172, 12288, %s174, %s160, 768, 384, 24
        $region24: #{tpu_custom_call.1} parent=19 // pred_fallthru
          _
      $region20: #{tpu_custom_call.1} parent=5 // pred_fallthru
        _
      %p180 = scmp.le.s32.totalorder 1, %s15
      %p181 = scmp.lt.s32.totalorder %s15, 3
      %p182 = pnand %p180, %p181
      %p183 = pneg %p182
      // Predicated region
      $region25: #{tpu_custom_call.1} parent=5 // pred_check
        _
      $region26: #{tpu_custom_call.1} parent=5 // pred_check_branch
        %185 = sbr.rel (%p182) target = $region28
      $region27: #{tpu_custom_call.1} parent=5 // pred_region
        %s186 = ssub.s32 %s15, 1
        // Predicated region
        $region29: #{tpu_custom_call.1} parent=27 // pred_check
          %p187 = pneg %p62
        $region30: #{tpu_custom_call.1} parent=27 // pred_check_branch
          %189 = sbr.rel (%p187) target = $region32
        $region31: #{tpu_custom_call.1} parent=27 // pred_region
          %190 = dma.done [#allocation3], 16384
        $region32: #{tpu_custom_call.1} parent=27 // pred_fallthru
          _
        %s191 = sand.u32 %s77, 1
        %s192 = scalar_lea.sflag [#allocation6], %s191
        %s193 = sand.u32 %s77, 1
        %s194 = smul.addr %s193, 768
        %s195 = scalar_lea.vmem [#allocation5], %s194
        // Predicated region
        $region33: #{tpu_custom_call.1} parent=27 // pred_check
          %p196 = pneg %p90
        $region34: #{tpu_custom_call.1} parent=27 // pred_check_branch
          %198 = sbr.rel (%p196) target = $region36
        $region35: #{tpu_custom_call.1} parent=27 // pred_region
          %199 = dma.done %s192, 12288
        $region36: #{tpu_custom_call.1} parent=27 // pred_fallthru
          _
        %p200 = pneg %p62
        %p201 = pneg %p59
        %s202 = sand.u32 %s77, 1
        %s203 = scalar_lea.sflag [#allocation6], %s202
        %s204 = sand.u32 %s77, 1
        %s205 = smul.addr %s204, 768
        %s206 = scalar_lea.vmem [#allocation5], %s205
        %p207 = pneg %p90
        %p208 = pneg %p87
        %p209 = pneg %p118
        %p210 = pneg %p115
        %s211 = sand.u32 %s105, 1
        %s212 = scalar_lea.sflag [#allocation4], %s211
        %s213 = sand.u32 %s105, 1
        %s214 = smul.addr %s213, 1536
        %s215 = scalar_lea.vmem [#allocation7], %s214
        %s216 = smul.u32 64, %s25
        %s217 = smul.u32 2, %s27
        %s218 = smul.u32 32, %s27
        %s219 = smul.u32 3, %s26
        %s220 = smul.u32 64, %s25
        %s221 = smul.u32 3, %s26
        %v222 = vld [vmem:[#allocation2] sm:$0xff]
        %v223 = vld [vmem:[#allocation2 + $0x8] sm:$0xff]
        %v224 = vld [vmem:[#allocation2 + $0x10] sm:$0xff]
        %v225 = vld [vmem:[#allocation2 + $0x18] sm:$0xff]
        %v226 = vld [vmem:[#allocation2 + $0x20] sm:$0xff]
        %v227 = vld [vmem:[#allocation2 + $0x28] sm:$0xff]
        %v228 = vld [vmem:[#allocation2 + $0x30] sm:$0xff]
        %v229 = vld [vmem:[#allocation2 + $0x38] sm:$0xff]
        %v230 = vld [vmem:[#allocation2 + $0x40] sm:$0xff]
        %v231 = vld [vmem:[#allocation2 + $0x48] sm:$0xff]
        %v232 = vld [vmem:[#allocation2 + $0x50] sm:$0xff]
        %v233 = vld [vmem:[#allocation2 + $0x58] sm:$0xff]
        %v234 = vld [vmem:[#allocation2 + $0x60] sm:$0xff]
        %v235 = vld [vmem:[#allocation2 + $0x68] sm:$0xff]
        %v236 = vld [vmem:[#allocation2 + $0x70] sm:$0xff]
        %v237 = vld [vmem:[#allocation2 + $0x78] sm:$0xff]
        %v238 = vld [vmem:[#allocation2 + $0x80] sm:$0xff]
        %v239 = vld [vmem:[#allocation2 + $0x88] sm:$0xff]
        %v240 = vld [vmem:[#allocation2 + $0x90] sm:$0xff]
        %v241 = vld [vmem:[#allocation2 + $0x98] sm:$0xff]
        %v242 = vld [vmem:[#allocation2 + $0xa0] sm:$0xff]
        %v243 = vld [vmem:[#allocation2 + $0xa8] sm:$0xff]
        %v244 = vld [vmem:[#allocation2 + $0xb0] sm:$0xff]
        %v245 = vld [vmem:[#allocation2 + $0xb8] sm:$0xff]
        %v246 = vld [vmem:[#allocation2 + $0xc0] sm:$0xff]
        %v247 = vld [vmem:[#allocation2 + $0xc8] sm:$0xff]
        %v248 = vld [vmem:[#allocation2 + $0xd0] sm:$0xff]
        %v249 = vld [vmem:[#allocation2 + $0xd8] sm:$0xff]
        %v250 = vld [vmem:[#allocation2 + $0xe0] sm:$0xff]
        %v251 = vld [vmem:[#allocation2 + $0xe8] sm:$0xff]
        %v252 = vld [vmem:[#allocation2 + $0xf0] sm:$0xff]
        %v253 = vld [vmem:[#allocation2 + $0xf8] sm:$0xff]
        %v254 = vld [vmem:[#allocation2 + $0x100] sm:$0xff]
        %v255 = vld [vmem:[#allocation2 + $0x108] sm:$0xff]
        %v256 = vld [vmem:[#allocation2 + $0x110] sm:$0xff]
        %v257 = vld [vmem:[#allocation2 + $0x118] sm:$0xff]
        %v258 = vld [vmem:[#allocation2 + $0x120] sm:$0xff]
        %v259 = vld [vmem:[#allocation2 + $0x128] sm:$0xff]
        %v260 = vld [vmem:[#allocation2 + $0x130] sm:$0xff]
        %v261 = vld [vmem:[#allocation2 + $0x138] sm:$0xff]
        %v262 = vld [vmem:[#allocation2 + $0x140] sm:$0xff]
        %v263 = vld [vmem:[#allocation2 + $0x148] sm:$0xff]
        %v264 = vld [vmem:[#allocation2 + $0x150] sm:$0xff]
        %v265 = vld [vmem:[#allocation2 + $0x158] sm:$0xff]
        %v266 = vld [vmem:[#allocation2 + $0x160] sm:$0xff]
        %v267 = vld [vmem:[#allocation2 + $0x168] sm:$0xff]
        %v268 = vld [vmem:[#allocation2 + $0x170] sm:$0xff]
        %v269 = vld [vmem:[#allocation2 + $0x178] sm:$0xff]
        %v270 = vld [vmem:[#allocation2 + $0x180] sm:$0xff]
        %v271 = vld [vmem:[#allocation2 + $0x188] sm:$0xff]
        %v272 = vld [vmem:[#allocation2 + $0x190] sm:$0xff]
        %v273 = vld [vmem:[#allocation2 + $0x198] sm:$0xff]
        %v274 = vld [vmem:[#allocation2 + $0x1a0] sm:$0xff]
        %v275 = vld [vmem:[#allocation2 + $0x1a8] sm:$0xff]
        %v276 = vld [vmem:[#allocation2 + $0x1b0] sm:$0xff]
        %v277 = vld [vmem:[#allocation2 + $0x1b8] sm:$0xff]
        %v278 = vld [vmem:[#allocation2 + $0x1c0] sm:$0xff]
        %v279 = vld [vmem:[#allocation2 + $0x1c8] sm:$0xff]
        %v280 = vld [vmem:[#allocation2 + $0x1d0] sm:$0xff]
        %v281 = vld [vmem:[#allocation2 + $0x1d8] sm:$0xff]
        %v282 = vld [vmem:[#allocation2 + $0x1e0] sm:$0xff]
        %v283 = vld [vmem:[#allocation2 + $0x1e8] sm:$0xff]
        %v284 = vld [vmem:[#allocation2 + $0x1f0] sm:$0xff]
        %v285 = vld [vmem:[#allocation2 + $0x1f8] sm:$0xff]
        %v286 = vld [vmem:[#allocation2 + $0x200] sm:$0xff]
        %v287 = vld [vmem:[#allocation2 + $0x208] sm:$0xff]
        %v288 = vld [vmem:[#allocation2 + $0x210] sm:$0xff]
        %v289 = vld [vmem:[#allocation2 + $0x218] sm:$0xff]
        %v290 = vld [vmem:[#allocation2 + $0x220] sm:$0xff]
        %v291 = vld [vmem:[#allocation2 + $0x228] sm:$0xff]
        %v292 = vld [vmem:[#allocation2 + $0x230] sm:$0xff]
        %v293 = vld [vmem:[#allocation2 + $0x238] sm:$0xff]
        %v294 = vld [vmem:[#allocation2 + $0x240] sm:$0xff]
        %v295 = vld [vmem:[#allocation2 + $0x248] sm:$0xff]
        %v296 = vld [vmem:[#allocation2 + $0x250] sm:$0xff]
        %v297 = vld [vmem:[#allocation2 + $0x258] sm:$0xff]
        %v298 = vld [vmem:[#allocation2 + $0x260] sm:$0xff]
        %v299 = vld [vmem:[#allocation2 + $0x268] sm:$0xff]
        %v300 = vld [vmem:[#allocation2 + $0x270] sm:$0xff]
        %v301 = vld [vmem:[#allocation2 + $0x278] sm:$0xff]
        %v302 = vld [vmem:[#allocation2 + $0x280] sm:$0xff]
        %v303 = vld [vmem:[#allocation2 + $0x288] sm:$0xff]
        %v304 = vld [vmem:[#allocation2 + $0x290] sm:$0xff]
        %v305 = vld [vmem:[#allocation2 + $0x298] sm:$0xff]
        %v306 = vld [vmem:[#allocation2 + $0x2a0] sm:$0xff]
        %v307 = vld [vmem:[#allocation2 + $0x2a8] sm:$0xff]
        %v308 = vld [vmem:[#allocation2 + $0x2b0] sm:$0xff]
        %v309 = vld [vmem:[#allocation2 + $0x2b8] sm:$0xff]
        %v310 = vld [vmem:[#allocation2 + $0x2c0] sm:$0xff]
        %v311 = vld [vmem:[#allocation2 + $0x2c8] sm:$0xff]
        %v312 = vld [vmem:[#allocation2 + $0x2d0] sm:$0xff]
        %v313 = vld [vmem:[#allocation2 + $0x2d8] sm:$0xff]
        %v314 = vld [vmem:[#allocation2 + $0x2e0] sm:$0xff]
        %v315 = vld [vmem:[#allocation2 + $0x2e8] sm:$0xff]
        %v316 = vld [vmem:[#allocation2 + $0x2f0] sm:$0xff]
        %v317 = vld [vmem:[#allocation2 + $0x2f8] sm:$0xff]
        %v318 = vld [vmem:[#allocation2 + $0x300] sm:$0xff]
        %v319 = vld [vmem:[#allocation2 + $0x308] sm:$0xff]
        %v320 = vld [vmem:[#allocation2 + $0x310] sm:$0xff]
        %v321 = vld [vmem:[#allocation2 + $0x318] sm:$0xff]
        %v322 = vld [vmem:[#allocation2 + $0x320] sm:$0xff]
        %v323 = vld [vmem:[#allocation2 + $0x328] sm:$0xff]
        %v324 = vld [vmem:[#allocation2 + $0x330] sm:$0xff]
        %v325 = vld [vmem:[#allocation2 + $0x338] sm:$0xff]
        %v326 = vld [vmem:[#allocation2 + $0x340] sm:$0xff]
        %v327 = vld [vmem:[#allocation2 + $0x348] sm:$0xff]
        %v328 = vld [vmem:[#allocation2 + $0x350] sm:$0xff]
        %v329 = vld [vmem:[#allocation2 + $0x358] sm:$0xff]
        %v330 = vld [vmem:[#allocation2 + $0x360] sm:$0xff]
        %v331 = vld [vmem:[#allocation2 + $0x368] sm:$0xff]
        %v332 = vld [vmem:[#allocation2 + $0x370] sm:$0xff]
        %v333 = vld [vmem:[#allocation2 + $0x378] sm:$0xff]
        %v334 = vld [vmem:[#allocation2 + $0x380] sm:$0xff]
        %v335 = vld [vmem:[#allocation2 + $0x388] sm:$0xff]
        %v336 = vld [vmem:[#allocation2 + $0x390] sm:$0xff]
        %v337 = vld [vmem:[#allocation2 + $0x398] sm:$0xff]
        %v338 = vld [vmem:[#allocation2 + $0x3a0] sm:$0xff]
        %v339 = vld [vmem:[#allocation2 + $0x3a8] sm:$0xff]
        %v340 = vld [vmem:[#allocation2 + $0x3b0] sm:$0xff]
        %v341 = vld [vmem:[#allocation2 + $0x3b8] sm:$0xff]
        %v342 = vld [vmem:[#allocation2 + $0x3c0] sm:$0xff]
        %v343 = vld [vmem:[#allocation2 + $0x3c8] sm:$0xff]
        %v344 = vld [vmem:[#allocation2 + $0x3d0] sm:$0xff]
        %v345 = vld [vmem:[#allocation2 + $0x3d8] sm:$0xff]
        %v346 = vld [vmem:[#allocation2 + $0x3e0] sm:$0xff]
        %v347 = vld [vmem:[#allocation2 + $0x3e8] sm:$0xff]
        %v348 = vld [vmem:[#allocation2 + $0x3f0] sm:$0xff]
        %v349 = vld [vmem:[#allocation2 + $0x3f8] sm:$0xff]
        %v350 = vld [vmem:[%s195] sm:$0xff]
        %v351 = vld [vmem:[%s195 + $0x8] sm:$0xff]
        %v352 = vld [vmem:[%s195 + $0x10] sm:$0xff]
        %v353 = vld [vmem:[%s195 + $0x18] sm:$0xff]
        %v354 = vld [vmem:[%s195 + $0x20] sm:$0xff]
        %v355 = vld [vmem:[%s195 + $0x28] sm:$0xff]
        %v356 = vld [vmem:[%s195 + $0x30] sm:$0xff]
        %v357 = vld [vmem:[%s195 + $0x38] sm:$0xff]
        %v358 = vld [vmem:[%s195 + $0x40] sm:$0xff]
        %v359 = vld [vmem:[%s195 + $0x48] sm:$0xff]
        %v360 = vld [vmem:[%s195 + $0x50] sm:$0xff]
        %v361 = vld [vmem:[%s195 + $0x58] sm:$0xff]
        %v362 = vld [vmem:[%s195 + $0x60] sm:$0xff]
        %v363 = vld [vmem:[%s195 + $0x68] sm:$0xff]
        %v364 = vld [vmem:[%s195 + $0x70] sm:$0xff]
        %v365 = vld [vmem:[%s195 + $0x78] sm:$0xff]
        %v366 = vld [vmem:[%s195 + $0x80] sm:$0xff]
        %v367 = vld [vmem:[%s195 + $0x88] sm:$0xff]
        %v368 = vld [vmem:[%s195 + $0x90] sm:$0xff]
        %v369 = vld [vmem:[%s195 + $0x98] sm:$0xff]
        %v370 = vld [vmem:[%s195 + $0xa0] sm:$0xff]
        %v371 = vld [vmem:[%s195 + $0xa8] sm:$0xff]
        %v372 = vld [vmem:[%s195 + $0xb0] sm:$0xff]
        %v373 = vld [vmem:[%s195 + $0xb8] sm:$0xff]
        %v374 = vld [vmem:[%s195 + $0xc0] sm:$0xff]
        %v375 = vld [vmem:[%s195 + $0xc8] sm:$0xff]
        %v376 = vld [vmem:[%s195 + $0xd0] sm:$0xff]
        %v377 = vld [vmem:[%s195 + $0xd8] sm:$0xff]
        %v378 = vld [vmem:[%s195 + $0xe0] sm:$0xff]
        %v379 = vld [vmem:[%s195 + $0xe8] sm:$0xff]
        %v380 = vld [vmem:[%s195 + $0xf0] sm:$0xff]
        %v381 = vld [vmem:[%s195 + $0xf8] sm:$0xff]
        %v382 = vld [vmem:[%s195 + $0x100] sm:$0xff]
        %v383 = vld [vmem:[%s195 + $0x108] sm:$0xff]
        %v384 = vld [vmem:[%s195 + $0x110] sm:$0xff]
        %v385 = vld [vmem:[%s195 + $0x118] sm:$0xff]
        %v386 = vld [vmem:[%s195 + $0x120] sm:$0xff]
        %v387 = vld [vmem:[%s195 + $0x128] sm:$0xff]
        %v388 = vld [vmem:[%s195 + $0x130] sm:$0xff]
        %v389 = vld [vmem:[%s195 + $0x138] sm:$0xff]
        %v390 = vld [vmem:[%s195 + $0x140] sm:$0xff]
        %v391 = vld [vmem:[%s195 + $0x148] sm:$0xff]
        %v392 = vld [vmem:[%s195 + $0x150] sm:$0xff]
        %v393 = vld [vmem:[%s195 + $0x158] sm:$0xff]
        %v394 = vld [vmem:[%s195 + $0x160] sm:$0xff]
        %v395 = vld [vmem:[%s195 + $0x168] sm:$0xff]
        %v396 = vld [vmem:[%s195 + $0x170] sm:$0xff]
        %v397 = vld [vmem:[%s195 + $0x178] sm:$0xff]
        %v398 = vld [vmem:[%s195 + $0x180] sm:$0xff]
        %v399 = vld [vmem:[%s195 + $0x188] sm:$0xff]
        %v400 = vld [vmem:[%s195 + $0x190] sm:$0xff]
        %v401 = vld [vmem:[%s195 + $0x198] sm:$0xff]
        %v402 = vld [vmem:[%s195 + $0x1a0] sm:$0xff]
        %v403 = vld [vmem:[%s195 + $0x1a8] sm:$0xff]
        %v404 = vld [vmem:[%s195 + $0x1b0] sm:$0xff]
        %v405 = vld [vmem:[%s195 + $0x1b8] sm:$0xff]
        %v406 = vld [vmem:[%s195 + $0x1c0] sm:$0xff]
        %v407 = vld [vmem:[%s195 + $0x1c8] sm:$0xff]
        %v408 = vld [vmem:[%s195 + $0x1d0] sm:$0xff]
        %v409 = vld [vmem:[%s195 + $0x1d8] sm:$0xff]
        %v410 = vld [vmem:[%s195 + $0x1e0] sm:$0xff]
        %v411 = vld [vmem:[%s195 + $0x1e8] sm:$0xff]
        %v412 = vld [vmem:[%s195 + $0x1f0] sm:$0xff]
        %v413 = vld [vmem:[%s195 + $0x1f8] sm:$0xff]
        %v414 = vld [vmem:[%s195 + $0x200] sm:$0xff]
        %v415 = vld [vmem:[%s195 + $0x208] sm:$0xff]
        %v416 = vld [vmem:[%s195 + $0x210] sm:$0xff]
        %v417 = vld [vmem:[%s195 + $0x218] sm:$0xff]
        %v418 = vld [vmem:[%s195 + $0x220] sm:$0xff]
        %v419 = vld [vmem:[%s195 + $0x228] sm:$0xff]
        %v420 = vld [vmem:[%s195 + $0x230] sm:$0xff]
        %v421 = vld [vmem:[%s195 + $0x238] sm:$0xff]
        %v422 = vld [vmem:[%s195 + $0x240] sm:$0xff]
        %v423 = vld [vmem:[%s195 + $0x248] sm:$0xff]
        %v424 = vld [vmem:[%s195 + $0x250] sm:$0xff]
        %v425 = vld [vmem:[%s195 + $0x258] sm:$0xff]
        %v426 = vld [vmem:[%s195 + $0x260] sm:$0xff]
        %v427 = vld [vmem:[%s195 + $0x268] sm:$0xff]
        %v428 = vld [vmem:[%s195 + $0x270] sm:$0xff]
        %v429 = vld [vmem:[%s195 + $0x278] sm:$0xff]
        %v430 = vld [vmem:[%s195 + $0x280] sm:$0xff]
        %v431 = vld [vmem:[%s195 + $0x288] sm:$0xff]
        %v432 = vld [vmem:[%s195 + $0x290] sm:$0xff]
        %v433 = vld [vmem:[%s195 + $0x298] sm:$0xff]
        %v434 = vld [vmem:[%s195 + $0x2a0] sm:$0xff]
        %v435 = vld [vmem:[%s195 + $0x2a8] sm:$0xff]
        %v436 = vld [vmem:[%s195 + $0x2b0] sm:$0xff]
        %v437 = vld [vmem:[%s195 + $0x2b8] sm:$0xff]
        %v438 = vld [vmem:[%s195 + $0x2c0] sm:$0xff]
        %v439 = vld [vmem:[%s195 + $0x2c8] sm:$0xff]
        %v440 = vld [vmem:[%s195 + $0x2d0] sm:$0xff]
        %v441 = vld [vmem:[%s195 + $0x2d8] sm:$0xff]
        %v442 = vld [vmem:[%s195 + $0x2e0] sm:$0xff]
        %v443 = vld [vmem:[%s195 + $0x2e8] sm:$0xff]
        %v444 = vld [vmem:[%s195 + $0x2f0] sm:$0xff]
        %v445 = vld [vmem:[%s195 + $0x2f8] sm:$0xff]
        %446 = vmatprep.subr.mxu0 %v396
        %447 = vmatpush1.msra.mxu0 %v395
        %448 = vmatprep.subr.mxu0 %v393
        %449 = vmatpush1.msra.mxu0 %v392
        %450 = vmatprep.subr.mxu0 %v390
        %451 = vmatpush1.msra.mxu0 %v389
        %452 = vmatprep.subr.mxu0 %v387
        %453 = vmatpush1.msra.mxu0 %v386
        %454 = vmatprep.subr.mxu0 %v384
        %455 = vmatpush1.msra.mxu0 %v383
        %456 = vmatprep.subr.mxu0 %v381
        %457 = vmatpush1.msra.mxu0 %v380
        %458 = vmatprep.subr.mxu0 %v378
        %459 = vmatpush1.msra.mxu0 %v377
        %460 = vmatprep.subr.mxu0 %v375
        %461 = vmatpush1.msra.mxu0 %v374
        %462 = vmatprep.subr.mxu0 %v372
        %463 = vmatpush1.msra.mxu0 %v371
        %464 = vmatprep.subr.mxu0 %v369
        %465 = vmatpush1.msra.mxu0 %v368
        %466 = vmatprep.subr.mxu0 %v366
        %467 = vmatpush1.msra.mxu0 %v365
        %468 = vmatprep.subr.mxu0 %v363
        %469 = vmatpush1.msra.mxu0 %v362
        %470 = vmatprep.subr.mxu0 %v360
        %471 = vmatpush1.msra.mxu0 %v359
        %472 = vmatprep.subr.mxu0 %v357
        %473 = vmatpush1.msra.mxu0 %v356
        %474 = vmatprep.subr.mxu0 %v354
        %475 = vmatpush1.msra.mxu0 %v353
        %476 = vmatprep.subr.mxu0 %v351
        %477 = vmatpush1.msra.mxu0 %v350
        %478 = vmatprep.subr.mxu0 %v444
        %479 = vmatpush2.msra.mxu0 %v443
        %480 = vmatprep.subr.mxu0 %v441
        %481 = vmatpush2.msra.mxu0 %v440
        %482 = vmatprep.subr.mxu0 %v438
        %483 = vmatpush2.msra.mxu0 %v437
        %484 = vmatprep.subr.mxu0 %v435
        %485 = vmatpush2.msra.mxu0 %v434
        %486 = vmatprep.subr.mxu0 %v432
        %487 = vmatpush2.msra.mxu0 %v431
        %488 = vmatprep.subr.mxu0 %v429
        %489 = vmatpush2.msra.mxu0 %v428
        %490 = vmatprep.subr.mxu0 %v426
        %491 = vmatpush2.msra.mxu0 %v425
        %492 = vmatprep.subr.mxu0 %v423
        %493 = vmatpush2.msra.mxu0 %v422
        %494 = vmatprep.subr.mxu0 %v420
        %495 = vmatpush2.msra.mxu0 %v419
        %496 = vmatprep.subr.mxu0 %v417
        %497 = vmatpush2.msra.mxu0 %v416
        %498 = vmatprep.subr.mxu0 %v414
        %499 = vmatpush2.msra.mxu0 %v413
        %500 = vmatprep.subr.mxu0 %v411
        %501 = vmatpush2.msra.mxu0 %v410
        %502 = vmatprep.subr.mxu0 %v408
        %503 = vmatpush2.msra.mxu0 %v407
        %504 = vmatprep.subr.mxu0 %v405
        %505 = vmatpush2.msra.mxu0 %v404
        %506 = vmatprep.subr.mxu0 %v402
        %507 = vmatpush2.msra.mxu0 %v401
        %508 = vmatprep.subr.mxu0 %v399
        %509 = vmatpush2.msra.mxu0 %v398
        %510 = vmatprep.mubr.f32.mxu0 %v223
        %511 = vmatmul.mubr.f32.gmra.mxu0 %v222
        %v512 = vpop.f32.mrf.mxu0
        %v513 = vadd.f32 0.0, %v512
        %v514 = vpop.f32.mrf.mxu0
        %v515 = vadd.f32 0.0, %v514
        %516 = vmatprep.mubr.f32.mxu0 %v225
        %517 = vmatmul.mubr.f32.gmra.mxu0 %v224
        %v518 = vpop.f32.mrf.mxu0
        %v519 = vadd.f32 0.0, %v518
        %v520 = vpop.f32.mrf.mxu0
        %v521 = vadd.f32 0.0, %v520
        %522 = vmatprep.mubr.f32.mxu0 %v227
        %523 = vmatmul.mubr.f32.gmra.mxu0 %v226
        %v524 = vpop.f32.mrf.mxu0
        %v525 = vadd.f32 0.0, %v524
        %v526 = vpop.f32.mrf.mxu0
        %v527 = vadd.f32 0.0, %v526
        %528 = vmatprep.mubr.f32.mxu0 %v229
        %529 = vmatmul.mubr.f32.gmra.mxu0 %v228
        %v530 = vpop.f32.mrf.mxu0
        %v531 = vadd.f32 0.0, %v530
        %v532 = vpop.f32.mrf.mxu0
        %v533 = vadd.f32 0.0, %v532
        %534 = vmatprep.mubr.f32.mxu0 %v231
        %535 = vmatmul.mubr.f32.gmra.mxu0 %v230
        %v536 = vpop.f32.mrf.mxu0
        %v537 = vadd.f32 0.0, %v536
        %v538 = vpop.f32.mrf.mxu0
        %v539 = vadd.f32 0.0, %v538
        %540 = vmatprep.mubr.f32.mxu0 %v233
        %541 = vmatmul.mubr.f32.gmra.mxu0 %v232
        %v542 = vpop.f32.mrf.mxu0
        %v543 = vadd.f32 0.0, %v542
        %v544 = vpop.f32.mrf.mxu0
        %v545 = vadd.f32 0.0, %v544
        %546 = vmatprep.mubr.f32.mxu0 %v235
        %547 = vmatmul.mubr.f32.gmra.mxu0 %v234
        %v548 = vpop.f32.mrf.mxu0
        %v549 = vadd.f32 0.0, %v548
        %v550 = vpop.f32.mrf.mxu0
        %v551 = vadd.f32 0.0, %v550
        %552 = vmatprep.mubr.f32.mxu0 %v237
        %553 = vmatmul.mubr.f32.gmra.mxu0 %v236
        %v554 = vpop.f32.mrf.mxu0
        %v555 = vadd.f32 0.0, %v554
        %v556 = vpop.f32.mrf.mxu0
        %v557 = vadd.f32 0.0, %v556
        %558 = vmatprep.mubr.f32.mxu0 %v239
        %559 = vmatmul.mubr.f32.gmra.mxu0 %v238
        %v560 = vpop.f32.mrf.mxu0
        %v561 = vadd.f32 0.0, %v560
        %v562 = vpop.f32.mrf.mxu0
        %v563 = vadd.f32 0.0, %v562
        %564 = vmatprep.mubr.f32.mxu0 %v241
        %565 = vmatmul.mubr.f32.gmra.mxu0 %v240
        %v566 = vpop.f32.mrf.mxu0
        %v567 = vadd.f32 0.0, %v566
        %v568 = vpop.f32.mrf.mxu0
        %v569 = vadd.f32 0.0, %v568
        %570 = vmatprep.mubr.f32.mxu0 %v243
        %571 = vmatmul.mubr.f32.gmra.mxu0 %v242
        %v572 = vpop.f32.mrf.mxu0
        %v573 = vadd.f32 0.0, %v572
        %v574 = vpop.f32.mrf.mxu0
        %v575 = vadd.f32 0.0, %v574
        %576 = vmatprep.mubr.f32.mxu0 %v245
        %577 = vmatmul.mubr.f32.gmra.mxu0 %v244
        %v578 = vpop.f32.mrf.mxu0
        %v579 = vadd.f32 0.0, %v578
        %v580 = vpop.f32.mrf.mxu0
        %v581 = vadd.f32 0.0, %v580
        %582 = vmatprep.mubr.f32.mxu0 %v247
        %583 = vmatmul.mubr.f32.gmra.mxu0 %v246
        %v584 = vpop.f32.mrf.mxu0
        %v585 = vadd.f32 0.0, %v584
        %v586 = vpop.f32.mrf.mxu0
        %v587 = vadd.f32 0.0, %v586
        %588 = vmatprep.mubr.f32.mxu0 %v249
        %589 = vmatmul.mubr.f32.gmra.mxu0 %v248
        %v590 = vpop.f32.mrf.mxu0
        %v591 = vadd.f32 0.0, %v590
        %v592 = vpop.f32.mrf.mxu0
        %v593 = vadd.f32 0.0, %v592
        %594 = vmatprep.mubr.f32.mxu0 %v251
        %595 = vmatmul.mubr.f32.gmra.mxu0 %v250
        %v596 = vpop.f32.mrf.mxu0
        %v597 = vadd.f32 0.0, %v596
        %v598 = vpop.f32.mrf.mxu0
        %v599 = vadd.f32 0.0, %v598
        %600 = vmatprep.mubr.f32.mxu0 %v253
        %601 = vmatmul.mubr.f32.gmra.mxu0 %v252
        %v602 = vpop.f32.mrf.mxu0
        %v603 = vadd.f32 0.0, %v602
        %v604 = vpop.f32.mrf.mxu0
        %v605 = vadd.f32 0.0, %v604
        %606 = vmatprep.mubr.f32.mxu0 %v255
        %607 = vmatmul.mubr.f32.gmra.mxu0 %v254
        %v608 = vpop.f32.mrf.mxu0
        %v609 = vadd.f32 0.0, %v608
        %v610 = vpop.f32.mrf.mxu0
        %v611 = vadd.f32 0.0, %v610
        %612 = vmatprep.mubr.f32.mxu0 %v257
        %613 = vmatmul.mubr.f32.gmra.mxu0 %v256
        %v614 = vpop.f32.mrf.mxu0
        %v615 = vadd.f32 0.0, %v614
        %v616 = vpop.f32.mrf.mxu0
        %v617 = vadd.f32 0.0, %v616
        %618 = vmatprep.mubr.f32.mxu0 %v259
        %619 = vmatmul.mubr.f32.gmra.mxu0 %v258
        %v620 = vpop.f32.mrf.mxu0
        %v621 = vadd.f32 0.0, %v620
        %v622 = vpop.f32.mrf.mxu0
        %v623 = vadd.f32 0.0, %v622
        %624 = vmatprep.mubr.f32.mxu0 %v261
        %625 = vmatmul.mubr.f32.gmra.mxu0 %v260
        %v626 = vpop.f32.mrf.mxu0
        %v627 = vadd.f32 0.0, %v626
        %v628 = vpop.f32.mrf.mxu0
        %v629 = vadd.f32 0.0, %v628
        %630 = vmatprep.mubr.f32.mxu0 %v263
        %631 = vmatmul.mubr.f32.gmra.mxu0 %v262
        %v632 = vpop.f32.mrf.mxu0
        %v633 = vadd.f32 0.0, %v632
        %v634 = vpop.f32.mrf.mxu0
        %v635 = vadd.f32 0.0, %v634
        %636 = vmatprep.mubr.f32.mxu0 %v265
        %637 = vmatmul.mubr.f32.gmra.mxu0 %v264
        %v638 = vpop.f32.mrf.mxu0
        %v639 = vadd.f32 0.0, %v638
        %v640 = vpop.f32.mrf.mxu0
        %v641 = vadd.f32 0.0, %v640
        %642 = vmatprep.mubr.f32.mxu0 %v267
        %643 = vmatmul.mubr.f32.gmra.mxu0 %v266
        %v644 = vpop.f32.mrf.mxu0
        %v645 = vadd.f32 0.0, %v644
        %v646 = vpop.f32.mrf.mxu0
        %v647 = vadd.f32 0.0, %v646
        %648 = vmatprep.mubr.f32.mxu0 %v269
        %649 = vmatmul.mubr.f32.gmra.mxu0 %v268
        %v650 = vpop.f32.mrf.mxu0
        %v651 = vadd.f32 0.0, %v650
        %v652 = vpop.f32.mrf.mxu0
        %v653 = vadd.f32 0.0, %v652
        %654 = vmatprep.mubr.f32.mxu0 %v271
        %655 = vmatmul.mubr.f32.gmra.mxu0 %v270
        %v656 = vpop.f32.mrf.mxu0
        %v657 = vadd.f32 0.0, %v656
        %v658 = vpop.f32.mrf.mxu0
        %v659 = vadd.f32 0.0, %v658
        %660 = vmatprep.mubr.f32.mxu0 %v273
        %661 = vmatmul.mubr.f32.gmra.mxu0 %v272
        %v662 = vpop.f32.mrf.mxu0
        %v663 = vadd.f32 0.0, %v662
        %v664 = vpop.f32.mrf.mxu0
        %v665 = vadd.f32 0.0, %v664
        %666 = vmatprep.mubr.f32.mxu0 %v275
        %667 = vmatmul.mubr.f32.gmra.mxu0 %v274
        %v668 = vpop.f32.mrf.mxu0
        %v669 = vadd.f32 0.0, %v668
        %v670 = vpop.f32.mrf.mxu0
        %v671 = vadd.f32 0.0, %v670
        %672 = vmatprep.mubr.f32.mxu0 %v277
        %673 = vmatmul.mubr.f32.gmra.mxu0 %v276
        %v674 = vpop.f32.mrf.mxu0
        %v675 = vadd.f32 0.0, %v674
        %v676 = vpop.f32.mrf.mxu0
        %v677 = vadd.f32 0.0, %v676
        %678 = vmatprep.mubr.f32.mxu0 %v279
        %679 = vmatmul.mubr.f32.gmra.mxu0 %v278
        %v680 = vpop.f32.mrf.mxu0
        %v681 = vadd.f32 0.0, %v680
        %v682 = vpop.f32.mrf.mxu0
        %v683 = vadd.f32 0.0, %v682
        %684 = vmatprep.mubr.f32.mxu0 %v281
        %685 = vmatmul.mubr.f32.gmra.mxu0 %v280
        %v686 = vpop.f32.mrf.mxu0
        %v687 = vadd.f32 0.0, %v686
        %v688 = vpop.f32.mrf.mxu0
        %v689 = vadd.f32 0.0, %v688
        %690 = vmatprep.mubr.f32.mxu0 %v283
        %691 = vmatmul.mubr.f32.gmra.mxu0 %v282
        %v692 = vpop.f32.mrf.mxu0
        %v693 = vadd.f32 0.0, %v692
        %v694 = vpop.f32.mrf.mxu0
        %v695 = vadd.f32 0.0, %v694
        %696 = vmatprep.mubr.f32.mxu0 %v285
        %697 = vmatmul.mubr.f32.gmra.mxu0 %v284
        %v698 = vpop.f32.mrf.mxu0
        %v699 = vadd.f32 0.0, %v698
        %v700 = vpop.f32.mrf.mxu0
        %v701 = vadd.f32 0.0, %v700
        %702 = vmatprep.mubr.f32.mxu0 %v287
        %703 = vmatmul.mubr.f32.gmra.mxu0 %v286
        %v704 = vpop.f32.mrf.mxu0
        %v705 = vadd.f32 0.0, %v704
        %v706 = vpop.f32.mrf.mxu0
        %v707 = vadd.f32 0.0, %v706
        %708 = vmatprep.mubr.f32.mxu0 %v289
        %709 = vmatmul.mubr.f32.gmra.mxu0 %v288
        %v710 = vpop.f32.mrf.mxu0
        %v711 = vadd.f32 0.0, %v710
        %v712 = vpop.f32.mrf.mxu0
        %v713 = vadd.f32 0.0, %v712
        %714 = vmatprep.mubr.f32.mxu0 %v291
        %715 = vmatmul.mubr.f32.gmra.mxu0 %v290
        %v716 = vpop.f32.mrf.mxu0
        %v717 = vadd.f32 0.0, %v716
        %v718 = vpop.f32.mrf.mxu0
        %v719 = vadd.f32 0.0, %v718
        %720 = vmatprep.mubr.f32.mxu0 %v293
        %721 = vmatmul.mubr.f32.gmra.mxu0 %v292
        %v722 = vpop.f32.mrf.mxu0
        %v723 = vadd.f32 0.0, %v722
        %v724 = vpop.f32.mrf.mxu0
        %v725 = vadd.f32 0.0, %v724
        %726 = vmatprep.mubr.f32.mxu0 %v295
        %727 = vmatmul.mubr.f32.gmra.mxu0 %v294
        %v728 = vpop.f32.mrf.mxu0
        %v729 = vadd.f32 0.0, %v728
        %v730 = vpop.f32.mrf.mxu0
        %v731 = vadd.f32 0.0, %v730
        %732 = vmatprep.mubr.f32.mxu0 %v297
        %733 = vmatmul.mubr.f32.gmra.mxu0 %v296
        %v734 = vpop.f32.mrf.mxu0
        %v735 = vadd.f32 0.0, %v734
        %v736 = vpop.f32.mrf.mxu0
        %v737 = vadd.f32 0.0, %v736
        %738 = vmatprep.mubr.f32.mxu0 %v299
        %739 = vmatmul.mubr.f32.gmra.mxu0 %v298
        %v740 = vpop.f32.mrf.mxu0
        %v741 = vadd.f32 0.0, %v740
        %v742 = vpop.f32.mrf.mxu0
        %v743 = vadd.f32 0.0, %v742
        %744 = vmatprep.mubr.f32.mxu0 %v301
        %745 = vmatmul.mubr.f32.gmra.mxu0 %v300
        %v746 = vpop.f32.mrf.mxu0
        %v747 = vadd.f32 0.0, %v746
        %v748 = vpop.f32.mrf.mxu0
        %v749 = vadd.f32 0.0, %v748
        %750 = vmatprep.mubr.f32.mxu0 %v303
        %751 = vmatmul.mubr.f32.gmra.mxu0 %v302
        %v752 = vpop.f32.mrf.mxu0
        %v753 = vadd.f32 0.0, %v752
        %v754 = vpop.f32.mrf.mxu0
        %v755 = vadd.f32 0.0, %v754
        %756 = vmatprep.mubr.f32.mxu0 %v305
        %757 = vmatmul.mubr.f32.gmra.mxu0 %v304
        %v758 = vpop.f32.mrf.mxu0
        %v759 = vadd.f32 0.0, %v758
        %v760 = vpop.f32.mrf.mxu0
        %v761 = vadd.f32 0.0, %v760
        %762 = vmatprep.mubr.f32.mxu0 %v307
        %763 = vmatmul.mubr.f32.gmra.mxu0 %v306
        %v764 = vpop.f32.mrf.mxu0
        %v765 = vadd.f32 0.0, %v764
        %v766 = vpop.f32.mrf.mxu0
        %v767 = vadd.f32 0.0, %v766
        %768 = vmatprep.mubr.f32.mxu0 %v309
        %769 = vmatmul.mubr.f32.gmra.mxu0 %v308
        %v770 = vpop.f32.mrf.mxu0
        %v771 = vadd.f32 0.0, %v770
        %v772 = vpop.f32.mrf.mxu0
        %v773 = vadd.f32 0.0, %v772
        %774 = vmatprep.mubr.f32.mxu0 %v311
        %775 = vmatmul.mubr.f32.gmra.mxu0 %v310
        %v776 = vpop.f32.mrf.mxu0
        %v777 = vadd.f32 0.0, %v776
        %v778 = vpop.f32.mrf.mxu0
        %v779 = vadd.f32 0.0, %v778
        %780 = vmatprep.mubr.f32.mxu0 %v313
        %781 = vmatmul.mubr.f32.gmra.mxu0 %v312
        %v782 = vpop.f32.mrf.mxu0
        %v783 = vadd.f32 0.0, %v782
        %v784 = vpop.f32.mrf.mxu0
        %v785 = vadd.f32 0.0, %v784
        %786 = vmatprep.mubr.f32.mxu0 %v315
        %787 = vmatmul.mubr.f32.gmra.mxu0 %v314
        %v788 = vpop.f32.mrf.mxu0
        %v789 = vadd.f32 0.0, %v788
        %v790 = vpop.f32.mrf.mxu0
        %v791 = vadd.f32 0.0, %v790
        %792 = vmatprep.mubr.f32.mxu0 %v317
        %793 = vmatmul.mubr.f32.gmra.mxu0 %v316
        %v794 = vpop.f32.mrf.mxu0
        %v795 = vadd.f32 0.0, %v794
        %v796 = vpop.f32.mrf.mxu0
        %v797 = vadd.f32 0.0, %v796
        %798 = vmatprep.mubr.f32.mxu0 %v319
        %799 = vmatmul.mubr.f32.gmra.mxu0 %v318
        %v800 = vpop.f32.mrf.mxu0
        %v801 = vadd.f32 0.0, %v800
        %v802 = vpop.f32.mrf.mxu0
        %v803 = vadd.f32 0.0, %v802
        %804 = vmatprep.mubr.f32.mxu0 %v321
        %805 = vmatmul.mubr.f32.gmra.mxu0 %v320
        %v806 = vpop.f32.mrf.mxu0
        %v807 = vadd.f32 0.0, %v806
        %v808 = vpop.f32.mrf.mxu0
        %v809 = vadd.f32 0.0, %v808
        %810 = vmatprep.mubr.f32.mxu0 %v323
        %811 = vmatmul.mubr.f32.gmra.mxu0 %v322
        %v812 = vpop.f32.mrf.mxu0
        %v813 = vadd.f32 0.0, %v812
        %v814 = vpop.f32.mrf.mxu0
        %v815 = vadd.f32 0.0, %v814
        %816 = vmatprep.mubr.f32.mxu0 %v325
        %817 = vmatmul.mubr.f32.gmra.mxu0 %v324
        %v818 = vpop.f32.mrf.mxu0
        %v819 = vadd.f32 0.0, %v818
        %v820 = vpop.f32.mrf.mxu0
        %v821 = vadd.f32 0.0, %v820
        %822 = vmatprep.mubr.f32.mxu0 %v327
        %823 = vmatmul.mubr.f32.gmra.mxu0 %v326
        %v824 = vpop.f32.mrf.mxu0
        %v825 = vadd.f32 0.0, %v824
        %v826 = vpop.f32.mrf.mxu0
        %v827 = vadd.f32 0.0, %v826
        %828 = vmatprep.mubr.f32.mxu0 %v329
        %829 = vmatmul.mubr.f32.gmra.mxu0 %v328
        %v830 = vpop.f32.mrf.mxu0
        %v831 = vadd.f32 0.0, %v830
        %v832 = vpop.f32.mrf.mxu0
        %v833 = vadd.f32 0.0, %v832
        %834 = vmatprep.mubr.f32.mxu0 %v331
        %835 = vmatmul.mubr.f32.gmra.mxu0 %v330
        %v836 = vpop.f32.mrf.mxu0
        %v837 = vadd.f32 0.0, %v836
        %v838 = vpop.f32.mrf.mxu0
        %v839 = vadd.f32 0.0, %v838
        %840 = vmatprep.mubr.f32.mxu0 %v333
        %841 = vmatmul.mubr.f32.gmra.mxu0 %v332
        %v842 = vpop.f32.mrf.mxu0
        %v843 = vadd.f32 0.0, %v842
        %v844 = vpop.f32.mrf.mxu0
        %v845 = vadd.f32 0.0, %v844
        %846 = vmatprep.mubr.f32.mxu0 %v335
        %847 = vmatmul.mubr.f32.gmra.mxu0 %v334
        %v848 = vpop.f32.mrf.mxu0
        %v849 = vadd.f32 0.0, %v848
        %v850 = vpop.f32.mrf.mxu0
        %v851 = vadd.f32 0.0, %v850
        %852 = vmatprep.mubr.f32.mxu0 %v337
        %853 = vmatmul.mubr.f32.gmra.mxu0 %v336
        %v854 = vpop.f32.mrf.mxu0
        %v855 = vadd.f32 0.0, %v854
        %v856 = vpop.f32.mrf.mxu0
        %v857 = vadd.f32 0.0, %v856
        %858 = vmatprep.mubr.f32.mxu0 %v339
        %859 = vmatmul.mubr.f32.gmra.mxu0 %v338
        %v860 = vpop.f32.mrf.mxu0
        %v861 = vadd.f32 0.0, %v860
        %v862 = vpop.f32.mrf.mxu0
        %v863 = vadd.f32 0.0, %v862
        %864 = vmatprep.mubr.f32.mxu0 %v341
        %865 = vmatmul.mubr.f32.gmra.mxu0 %v340
        %v866 = vpop.f32.mrf.mxu0
        %v867 = vadd.f32 0.0, %v866
        %v868 = vpop.f32.mrf.mxu0
        %v869 = vadd.f32 0.0, %v868
        %870 = vmatprep.mubr.f32.mxu0 %v343
        %871 = vmatmul.mubr.f32.gmra.mxu0 %v342
        %v872 = vpop.f32.mrf.mxu0
        %v873 = vadd.f32 0.0, %v872
        %v874 = vpop.f32.mrf.mxu0
        %v875 = vadd.f32 0.0, %v874
        %876 = vmatprep.mubr.f32.mxu0 %v345
        %877 = vmatmul.mubr.f32.gmra.mxu0 %v344
        %v878 = vpop.f32.mrf.mxu0
        %v879 = vadd.f32 0.0, %v878
        %v880 = vpop.f32.mrf.mxu0
        %v881 = vadd.f32 0.0, %v880
        %882 = vmatprep.mubr.f32.mxu0 %v347
        %883 = vmatmul.mubr.f32.gmra.mxu0 %v346
        %v884 = vpop.f32.mrf.mxu0
        %v885 = vadd.f32 0.0, %v884
        %v886 = vpop.f32.mrf.mxu0
        %v887 = vadd.f32 0.0, %v886
        %888 = vmatprep.mubr.f32.mxu0 %v349
        %889 = vmatmul.mubr.f32.gmra.mxu0 %v348
        %v890 = vpop.f32.mrf.mxu0
        %v891 = vadd.f32 0.0, %v890
        %v892 = vpop.f32.mrf.mxu0
        %v893 = vadd.f32 0.0, %v892
        %894 = vdwg.mxu0
        %895 = vmatprep.subr.mxu0 0.0
        %896 = vmatpush1.msra.mxu0 %v397
        %897 = vmatprep.subr.mxu0 0.0
        %898 = vmatpush1.msra.mxu0 %v394
        %899 = vmatprep.subr.mxu0 0.0
        %900 = vmatpush1.msra.mxu0 %v391
        %901 = vmatprep.subr.mxu0 0.0
        %902 = vmatpush1.msra.mxu0 %v388
        %903 = vmatprep.subr.mxu0 0.0
        %904 = vmatpush1.msra.mxu0 %v385
        %905 = vmatprep.subr.mxu0 0.0
        %906 = vmatpush1.msra.mxu0 %v382
        %907 = vmatprep.subr.mxu0 0.0
        %908 = vmatpush1.msra.mxu0 %v379
        %909 = vmatprep.subr.mxu0 0.0
        %910 = vmatpush1.msra.mxu0 %v376
        %911 = vmatprep.subr.mxu0 0.0
        %912 = vmatpush1.msra.mxu0 %v373
        %913 = vmatprep.subr.mxu0 0.0
        %914 = vmatpush1.msra.mxu0 %v370
        %915 = vmatprep.subr.mxu0 0.0
        %916 = vmatpush1.msra.mxu0 %v367
        %917 = vmatprep.subr.mxu0 0.0
        %918 = vmatpush1.msra.mxu0 %v364
        %919 = vmatprep.subr.mxu0 0.0
        %920 = vmatpush1.msra.mxu0 %v361
        %921 = vmatprep.subr.mxu0 0.0
        %922 = vmatpush1.msra.mxu0 %v358
        %923 = vmatprep.subr.mxu0 0.0
        %924 = vmatpush1.msra.mxu0 %v355
        %925 = vmatprep.subr.mxu0 0.0
        %926 = vmatpush1.msra.mxu0 %v352
        %927 = vmatprep.subr.mxu0 0.0
        %928 = vmatpush2.msra.mxu0 %v445
        %929 = vmatprep.subr.mxu0 0.0
        %930 = vmatpush2.msra.mxu0 %v442
        %931 = vmatprep.subr.mxu0 0.0
        %932 = vmatpush2.msra.mxu0 %v439
        %933 = vmatprep.subr.mxu0 0.0
        %934 = vmatpush2.msra.mxu0 %v436
        %935 = vmatprep.subr.mxu0 0.0
        %936 = vmatpush2.msra.mxu0 %v433
        %937 = vmatprep.subr.mxu0 0.0
        %938 = vmatpush2.msra.mxu0 %v430
        %939 = vmatprep.subr.mxu0 0.0
        %940 = vmatpush2.msra.mxu0 %v427
        %941 = vmatprep.subr.mxu0 0.0
        %942 = vmatpush2.msra.mxu0 %v424
        %943 = vmatprep.subr.mxu0 0.0
        %944 = vmatpush2.msra.mxu0 %v421
        %945 = vmatprep.subr.mxu0 0.0
        %946 = vmatpush2.msra.mxu0 %v418
        %947 = vmatprep.subr.mxu0 0.0
        %948 = vmatpush2.msra.mxu0 %v415
        %949 = vmatprep.subr.mxu0 0.0
        %950 = vmatpush2.msra.mxu0 %v412
        %951 = vmatprep.subr.mxu0 0.0
        %952 = vmatpush2.msra.mxu0 %v409
        %953 = vmatprep.subr.mxu0 0.0
        %954 = vmatpush2.msra.mxu0 %v406
        %955 = vmatprep.subr.mxu0 0.0
        %956 = vmatpush2.msra.mxu0 %v403
        %957 = vmatprep.subr.mxu0 0.0
        %958 = vmatpush2.msra.mxu0 %v400
        %959 = vmatprep.mubr.f32.mxu0 %v223
        %960 = vmatmul.mubr.f32.gmra.mxu0 %v222
        %v961 = vpop.f32.mrf.mxu0
        %v962 = vadd.f32 0.0, %v961
        %v963 = vpop.f32.mrf.mxu0
        %964 = vmatprep.mubr.f32.mxu0 %v225
        %965 = vmatmul.mubr.f32.gmra.mxu0 %v224
        %v966 = vpop.f32.mrf.mxu0
        %v967 = vadd.f32 0.0, %v966
        %v968 = vpop.f32.mrf.mxu0
        %969 = vmatprep.mubr.f32.mxu0 %v227
        %970 = vmatmul.mubr.f32.gmra.mxu0 %v226
        %v971 = vpop.f32.mrf.mxu0
        %v972 = vadd.f32 0.0, %v971
        %v973 = vpop.f32.mrf.mxu0
        %974 = vmatprep.mubr.f32.mxu0 %v229
        %975 = vmatmul.mubr.f32.gmra.mxu0 %v228
        %v976 = vpop.f32.mrf.mxu0
        %v977 = vadd.f32 0.0, %v976
        %v978 = vpop.f32.mrf.mxu0
        %979 = vmatprep.mubr.f32.mxu0 %v231
        %980 = vmatmul.mubr.f32.gmra.mxu0 %v230
        %v981 = vpop.f32.mrf.mxu0
        %v982 = vadd.f32 0.0, %v981
        %v983 = vpop.f32.mrf.mxu0
        %984 = vmatprep.mubr.f32.mxu0 %v233
        %985 = vmatmul.mubr.f32.gmra.mxu0 %v232
        %v986 = vpop.f32.mrf.mxu0
        %v987 = vadd.f32 0.0, %v986
        %v988 = vpop.f32.mrf.mxu0
        %989 = vmatprep.mubr.f32.mxu0 %v235
        %990 = vmatmul.mubr.f32.gmra.mxu0 %v234
        %v991 = vpop.f32.mrf.mxu0
        %v992 = vadd.f32 0.0, %v991
        %v993 = vpop.f32.mrf.mxu0
        %994 = vmatprep.mubr.f32.mxu0 %v237
        %995 = vmatmul.mubr.f32.gmra.mxu0 %v236
        %v996 = vpop.f32.mrf.mxu0
        %v997 = vadd.f32 0.0, %v996
        %v998 = vpop.f32.mrf.mxu0
        %999 = vmatprep.mubr.f32.mxu0 %v239
        %1000 = vmatmul.mubr.f32.gmra.mxu0 %v238
        %v1001 = vpop.f32.mrf.mxu0
        %v1002 = vadd.f32 0.0, %v1001
        %v1003 = vpop.f32.mrf.mxu0
        %1004 = vmatprep.mubr.f32.mxu0 %v241
        %1005 = vmatmul.mubr.f32.gmra.mxu0 %v240
        %v1006 = vpop.f32.mrf.mxu0
        %v1007 = vadd.f32 0.0, %v1006
        %v1008 = vpop.f32.mrf.mxu0
        %1009 = vmatprep.mubr.f32.mxu0 %v243
        %1010 = vmatmul.mubr.f32.gmra.mxu0 %v242
        %v1011 = vpop.f32.mrf.mxu0
        %v1012 = vadd.f32 0.0, %v1011
        %v1013 = vpop.f32.mrf.mxu0
        %1014 = vmatprep.mubr.f32.mxu0 %v245
        %1015 = vmatmul.mubr.f32.gmra.mxu0 %v244
        %v1016 = vpop.f32.mrf.mxu0
        %v1017 = vadd.f32 0.0, %v1016
        %v1018 = vpop.f32.mrf.mxu0
        %1019 = vmatprep.mubr.f32.mxu0 %v247
        %1020 = vmatmul.mubr.f32.gmra.mxu0 %v246
        %v1021 = vpop.f32.mrf.mxu0
        %v1022 = vadd.f32 0.0, %v1021
        %v1023 = vpop.f32.mrf.mxu0
        %1024 = vmatprep.mubr.f32.mxu0 %v249
        %1025 = vmatmul.mubr.f32.gmra.mxu0 %v248
        %v1026 = vpop.f32.mrf.mxu0
        %v1027 = vadd.f32 0.0, %v1026
        %v1028 = vpop.f32.mrf.mxu0
        %1029 = vmatprep.mubr.f32.mxu0 %v251
        %1030 = vmatmul.mubr.f32.gmra.mxu0 %v250
        %v1031 = vpop.f32.mrf.mxu0
        %v1032 = vadd.f32 0.0, %v1031
        %v1033 = vpop.f32.mrf.mxu0
        %1034 = vmatprep.mubr.f32.mxu0 %v253
        %1035 = vmatmul.mubr.f32.gmra.mxu0 %v252
        %v1036 = vpop.f32.mrf.mxu0
        %v1037 = vadd.f32 0.0, %v1036
        %v1038 = vpop.f32.mrf.mxu0
        %1039 = vmatprep.mubr.f32.mxu0 %v255
        %1040 = vmatmul.mubr.f32.gmra.mxu0 %v254
        %v1041 = vpop.f32.mrf.mxu0
        %v1042 = vadd.f32 0.0, %v1041
        %v1043 = vpop.f32.mrf.mxu0
        %1044 = vmatprep.mubr.f32.mxu0 %v257
        %1045 = vmatmul.mubr.f32.gmra.mxu0 %v256
        %v1046 = vpop.f32.mrf.mxu0
        %v1047 = vadd.f32 0.0, %v1046
        %v1048 = vpop.f32.mrf.mxu0
        %1049 = vmatprep.mubr.f32.mxu0 %v259
        %1050 = vmatmul.mubr.f32.gmra.mxu0 %v258
        %v1051 = vpop.f32.mrf.mxu0
        %v1052 = vadd.f32 0.0, %v1051
        %v1053 = vpop.f32.mrf.mxu0
        %1054 = vmatprep.mubr.f32.mxu0 %v261
        %1055 = vmatmul.mubr.f32.gmra.mxu0 %v260
        %v1056 = vpop.f32.mrf.mxu0
        %v1057 = vadd.f32 0.0, %v1056
        %v1058 = vpop.f32.mrf.mxu0
        %1059 = vmatprep.mubr.f32.mxu0 %v263
        %1060 = vmatmul.mubr.f32.gmra.mxu0 %v262
        %v1061 = vpop.f32.mrf.mxu0
        %v1062 = vadd.f32 0.0, %v1061
        %v1063 = vpop.f32.mrf.mxu0
        %1064 = vmatprep.mubr.f32.mxu0 %v265
        %1065 = vmatmul.mubr.f32.gmra.mxu0 %v264
        %v1066 = vpop.f32.mrf.mxu0
        %v1067 = vadd.f32 0.0, %v1066
        %v1068 = vpop.f32.mrf.mxu0
        %1069 = vmatprep.mubr.f32.mxu0 %v267
        %1070 = vmatmul.mubr.f32.gmra.mxu0 %v266
        %v1071 = vpop.f32.mrf.mxu0
        %v1072 = vadd.f32 0.0, %v1071
        %v1073 = vpop.f32.mrf.mxu0
        %1074 = vmatprep.mubr.f32.mxu0 %v269
        %1075 = vmatmul.mubr.f32.gmra.mxu0 %v268
        %v1076 = vpop.f32.mrf.mxu0
        %v1077 = vadd.f32 0.0, %v1076
        %v1078 = vpop.f32.mrf.mxu0
        %1079 = vmatprep.mubr.f32.mxu0 %v271
        %1080 = vmatmul.mubr.f32.gmra.mxu0 %v270
        %v1081 = vpop.f32.mrf.mxu0
        %v1082 = vadd.f32 0.0, %v1081
        %v1083 = vpop.f32.mrf.mxu0
        %1084 = vmatprep.mubr.f32.mxu0 %v273
        %1085 = vmatmul.mubr.f32.gmra.mxu0 %v272
        %v1086 = vpop.f32.mrf.mxu0
        %v1087 = vadd.f32 0.0, %v1086
        %v1088 = vpop.f32.mrf.mxu0
        %1089 = vmatprep.mubr.f32.mxu0 %v275
        %1090 = vmatmul.mubr.f32.gmra.mxu0 %v274
        %v1091 = vpop.f32.mrf.mxu0
        %v1092 = vadd.f32 0.0, %v1091
        %v1093 = vpop.f32.mrf.mxu0
        %1094 = vmatprep.mubr.f32.mxu0 %v277
        %1095 = vmatmul.mubr.f32.gmra.mxu0 %v276
        %v1096 = vpop.f32.mrf.mxu0
        %v1097 = vadd.f32 0.0, %v1096
        %v1098 = vpop.f32.mrf.mxu0
        %1099 = vmatprep.mubr.f32.mxu0 %v279
        %1100 = vmatmul.mubr.f32.gmra.mxu0 %v278
        %v1101 = vpop.f32.mrf.mxu0
        %v1102 = vadd.f32 0.0, %v1101
        %v1103 = vpop.f32.mrf.mxu0
        %1104 = vmatprep.mubr.f32.mxu0 %v281
        %1105 = vmatmul.mubr.f32.gmra.mxu0 %v280
        %v1106 = vpop.f32.mrf.mxu0
        %v1107 = vadd.f32 0.0, %v1106
        %v1108 = vpop.f32.mrf.mxu0
        %1109 = vmatprep.mubr.f32.mxu0 %v283
        %1110 = vmatmul.mubr.f32.gmra.mxu0 %v282
        %v1111 = vpop.f32.mrf.mxu0
        %v1112 = vadd.f32 0.0, %v1111
        %v1113 = vpop.f32.mrf.mxu0
        %1114 = vmatprep.mubr.f32.mxu0 %v285
        %1115 = vmatmul.mubr.f32.gmra.mxu0 %v284
        %v1116 = vpop.f32.mrf.mxu0
        %v1117 = vadd.f32 0.0, %v1116
        %v1118 = vpop.f32.mrf.mxu0
        %1119 = vmatprep.mubr.f32.mxu0 %v287
        %1120 = vmatmul.mubr.f32.gmra.mxu0 %v286
        %v1121 = vpop.f32.mrf.mxu0
        %v1122 = vadd.f32 0.0, %v1121
        %v1123 = vpop.f32.mrf.mxu0
        %1124 = vmatprep.mubr.f32.mxu0 %v289
        %1125 = vmatmul.mubr.f32.gmra.mxu0 %v288
        %v1126 = vpop.f32.mrf.mxu0
        %v1127 = vadd.f32 0.0, %v1126
        %v1128 = vpop.f32.mrf.mxu0
        %1129 = vmatprep.mubr.f32.mxu0 %v291
        %1130 = vmatmul.mubr.f32.gmra.mxu0 %v290
        %v1131 = vpop.f32.mrf.mxu0
        %v1132 = vadd.f32 0.0, %v1131
        %v1133 = vpop.f32.mrf.mxu0
        %1134 = vmatprep.mubr.f32.mxu0 %v293
        %1135 = vmatmul.mubr.f32.gmra.mxu0 %v292
        %v1136 = vpop.f32.mrf.mxu0
        %v1137 = vadd.f32 0.0, %v1136
        %v1138 = vpop.f32.mrf.mxu0
        %1139 = vmatprep.mubr.f32.mxu0 %v295
        %1140 = vmatmul.mubr.f32.gmra.mxu0 %v294
        %v1141 = vpop.f32.mrf.mxu0
        %v1142 = vadd.f32 0.0, %v1141
        %v1143 = vpop.f32.mrf.mxu0
        %1144 = vmatprep.mubr.f32.mxu0 %v297
        %1145 = vmatmul.mubr.f32.gmra.mxu0 %v296
        %v1146 = vpop.f32.mrf.mxu0
        %v1147 = vadd.f32 0.0, %v1146
        %v1148 = vpop.f32.mrf.mxu0
        %1149 = vmatprep.mubr.f32.mxu0 %v299
        %1150 = vmatmul.mubr.f32.gmra.mxu0 %v298
        %v1151 = vpop.f32.mrf.mxu0
        %v1152 = vadd.f32 0.0, %v1151
        %v1153 = vpop.f32.mrf.mxu0
        %1154 = vmatprep.mubr.f32.mxu0 %v301
        %1155 = vmatmul.mubr.f32.gmra.mxu0 %v300
        %v1156 = vpop.f32.mrf.mxu0
        %v1157 = vadd.f32 0.0, %v1156
        %v1158 = vpop.f32.mrf.mxu0
        %1159 = vmatprep.mubr.f32.mxu0 %v303
        %1160 = vmatmul.mubr.f32.gmra.mxu0 %v302
        %v1161 = vpop.f32.mrf.mxu0
        %v1162 = vadd.f32 0.0, %v1161
        %v1163 = vpop.f32.mrf.mxu0
        %1164 = vmatprep.mubr.f32.mxu0 %v305
        %1165 = vmatmul.mubr.f32.gmra.mxu0 %v304
        %v1166 = vpop.f32.mrf.mxu0
        %v1167 = vadd.f32 0.0, %v1166
        %v1168 = vpop.f32.mrf.mxu0
        %1169 = vmatprep.mubr.f32.mxu0 %v307
        %1170 = vmatmul.mubr.f32.gmra.mxu0 %v306
        %v1171 = vpop.f32.mrf.mxu0
        %v1172 = vadd.f32 0.0, %v1171
        %v1173 = vpop.f32.mrf.mxu0
        %1174 = vmatprep.mubr.f32.mxu0 %v309
        %1175 = vmatmul.mubr.f32.gmra.mxu0 %v308
        %v1176 = vpop.f32.mrf.mxu0
        %v1177 = vadd.f32 0.0, %v1176
        %v1178 = vpop.f32.mrf.mxu0
        %1179 = vmatprep.mubr.f32.mxu0 %v311
        %1180 = vmatmul.mubr.f32.gmra.mxu0 %v310
        %v1181 = vpop.f32.mrf.mxu0
        %v1182 = vadd.f32 0.0, %v1181
        %v1183 = vpop.f32.mrf.mxu0
        %1184 = vmatprep.mubr.f32.mxu0 %v313
        %1185 = vmatmul.mubr.f32.gmra.mxu0 %v312
        %v1186 = vpop.f32.mrf.mxu0
        %v1187 = vadd.f32 0.0, %v1186
        %v1188 = vpop.f32.mrf.mxu0
        %1189 = vmatprep.mubr.f32.mxu0 %v315
        %1190 = vmatmul.mubr.f32.gmra.mxu0 %v314
        %v1191 = vpop.f32.mrf.mxu0
        %v1192 = vadd.f32 0.0, %v1191
        %v1193 = vpop.f32.mrf.mxu0
        %1194 = vmatprep.mubr.f32.mxu0 %v317
        %1195 = vmatmul.mubr.f32.gmra.mxu0 %v316
        %v1196 = vpop.f32.mrf.mxu0
        %v1197 = vadd.f32 0.0, %v1196
        %v1198 = vpop.f32.mrf.mxu0
        %1199 = vmatprep.mubr.f32.mxu0 %v319
        %1200 = vmatmul.mubr.f32.gmra.mxu0 %v318
        %v1201 = vpop.f32.mrf.mxu0
        %v1202 = vadd.f32 0.0, %v1201
        %v1203 = vpop.f32.mrf.mxu0
        %1204 = vmatprep.mubr.f32.mxu0 %v321
        %1205 = vmatmul.mubr.f32.gmra.mxu0 %v320
        %v1206 = vpop.f32.mrf.mxu0
        %v1207 = vadd.f32 0.0, %v1206
        %v1208 = vpop.f32.mrf.mxu0
        %1209 = vmatprep.mubr.f32.mxu0 %v323
        %1210 = vmatmul.mubr.f32.gmra.mxu0 %v322
        %v1211 = vpop.f32.mrf.mxu0
        %v1212 = vadd.f32 0.0, %v1211
        %v1213 = vpop.f32.mrf.mxu0
        %1214 = vmatprep.mubr.f32.mxu0 %v325
        %1215 = vmatmul.mubr.f32.gmra.mxu0 %v324
        %v1216 = vpop.f32.mrf.mxu0
        %v1217 = vadd.f32 0.0, %v1216
        %v1218 = vpop.f32.mrf.mxu0
        %1219 = vmatprep.mubr.f32.mxu0 %v327
        %1220 = vmatmul.mubr.f32.gmra.mxu0 %v326
        %v1221 = vpop.f32.mrf.mxu0
        %v1222 = vadd.f32 0.0, %v1221
        %v1223 = vpop.f32.mrf.mxu0
        %1224 = vmatprep.mubr.f32.mxu0 %v329
        %1225 = vmatmul.mubr.f32.gmra.mxu0 %v328
        %v1226 = vpop.f32.mrf.mxu0
        %v1227 = vadd.f32 0.0, %v1226
        %v1228 = vpop.f32.mrf.mxu0
        %1229 = vmatprep.mubr.f32.mxu0 %v331
        %1230 = vmatmul.mubr.f32.gmra.mxu0 %v330
        %v1231 = vpop.f32.mrf.mxu0
        %v1232 = vadd.f32 0.0, %v1231
        %v1233 = vpop.f32.mrf.mxu0
        %1234 = vmatprep.mubr.f32.mxu0 %v333
        %1235 = vmatmul.mubr.f32.gmra.mxu0 %v332
        %v1236 = vpop.f32.mrf.mxu0
        %v1237 = vadd.f32 0.0, %v1236
        %v1238 = vpop.f32.mrf.mxu0
        %1239 = vmatprep.mubr.f32.mxu0 %v335
        %1240 = vmatmul.mubr.f32.gmra.mxu0 %v334
        %v1241 = vpop.f32.mrf.mxu0
        %v1242 = vadd.f32 0.0, %v1241
        %v1243 = vpop.f32.mrf.mxu0
        %1244 = vmatprep.mubr.f32.mxu0 %v337
        %1245 = vmatmul.mubr.f32.gmra.mxu0 %v336
        %v1246 = vpop.f32.mrf.mxu0
        %v1247 = vadd.f32 0.0, %v1246
        %v1248 = vpop.f32.mrf.mxu0
        %1249 = vmatprep.mubr.f32.mxu0 %v339
        %1250 = vmatmul.mubr.f32.gmra.mxu0 %v338
        %v1251 = vpop.f32.mrf.mxu0
        %v1252 = vadd.f32 0.0, %v1251
        %v1253 = vpop.f32.mrf.mxu0
        %1254 = vmatprep.mubr.f32.mxu0 %v341
        %1255 = vmatmul.mubr.f32.gmra.mxu0 %v340
        %v1256 = vpop.f32.mrf.mxu0
        %v1257 = vadd.f32 0.0, %v1256
        %v1258 = vpop.f32.mrf.mxu0
        %1259 = vmatprep.mubr.f32.mxu0 %v343
        %1260 = vmatmul.mubr.f32.gmra.mxu0 %v342
        %v1261 = vpop.f32.mrf.mxu0
        %v1262 = vadd.f32 0.0, %v1261
        %v1263 = vpop.f32.mrf.mxu0
        %1264 = vmatprep.mubr.f32.mxu0 %v345
        %1265 = vmatmul.mubr.f32.gmra.mxu0 %v344
        %v1266 = vpop.f32.mrf.mxu0
        %v1267 = vadd.f32 0.0, %v1266
        %v1268 = vpop.f32.mrf.mxu0
        %1269 = vmatprep.mubr.f32.mxu0 %v347
        %1270 = vmatmul.mubr.f32.gmra.mxu0 %v346
        %v1271 = vpop.f32.mrf.mxu0
        %v1272 = vadd.f32 0.0, %v1271
        %v1273 = vpop.f32.mrf.mxu0
        %1274 = vmatprep.mubr.f32.mxu0 %v349
        %1275 = vmatmul.mubr.f32.gmra.mxu0 %v348
        %v1276 = vpop.f32.mrf.mxu0
        %v1277 = vadd.f32 0.0, %v1276
        %v1278 = vpop.f32.mrf.mxu0
        %1279 = vdwg.mxu0
        %1280 = vst [vmem:[%s215] sm:$0xff] %v513
        %1281 = vst [vmem:[%s215 + $0x8] sm:$0xff] %v515
        %1282 = vst [vmem:[%s215 + $0x10] sm:$0xff] %v962
        %1283 = vst [vmem:[%s215 + $0x18] sm:$0xff] %v519
        %1284 = vst [vmem:[%s215 + $0x20] sm:$0xff] %v521
        %1285 = vst [vmem:[%s215 + $0x28] sm:$0xff] %v967
        %1286 = vst [vmem:[%s215 + $0x30] sm:$0xff] %v525
        %1287 = vst [vmem:[%s215 + $0x38] sm:$0xff] %v527
        %1288 = vst [vmem:[%s215 + $0x40] sm:$0xff] %v972
        %1289 = vst [vmem:[%s215 + $0x48] sm:$0xff] %v531
        %1290 = vst [vmem:[%s215 + $0x50] sm:$0xff] %v533
        %1291 = vst [vmem:[%s215 + $0x58] sm:$0xff] %v977
        %1292 = vst [vmem:[%s215 + $0x60] sm:$0xff] %v537
        %1293 = vst [vmem:[%s215 + $0x68] sm:$0xff] %v539
        %1294 = vst [vmem:[%s215 + $0x70] sm:$0xff] %v982
        %1295 = vst [vmem:[%s215 + $0x78] sm:$0xff] %v543
        %1296 = vst [vmem:[%s215 + $0x80] sm:$0xff] %v545
        %1297 = vst [vmem:[%s215 + $0x88] sm:$0xff] %v987
        %1298 = vst [vmem:[%s215 + $0x90] sm:$0xff] %v549
        %1299 = vst [vmem:[%s215 + $0x98] sm:$0xff] %v551
        %1300 = vst [vmem:[%s215 + $0xa0] sm:$0xff] %v992
        %1301 = vst [vmem:[%s215 + $0xa8] sm:$0xff] %v555
        %1302 = vst [vmem:[%s215 + $0xb0] sm:$0xff] %v557
        %1303 = vst [vmem:[%s215 + $0xb8] sm:$0xff] %v997
        %1304 = vst [vmem:[%s215 + $0xc0] sm:$0xff] %v561
        %1305 = vst [vmem:[%s215 + $0xc8] sm:$0xff] %v563
        %1306 = vst [vmem:[%s215 + $0xd0] sm:$0xff] %v1002
        %1307 = vst [vmem:[%s215 + $0xd8] sm:$0xff] %v567
        %1308 = vst [vmem:[%s215 + $0xe0] sm:$0xff] %v569
        %1309 = vst [vmem:[%s215 + $0xe8] sm:$0xff] %v1007
        %1310 = vst [vmem:[%s215 + $0xf0] sm:$0xff] %v573
        %1311 = vst [vmem:[%s215 + $0xf8] sm:$0xff] %v575
        %1312 = vst [vmem:[%s215 + $0x100] sm:$0xff] %v1012
        %1313 = vst [vmem:[%s215 + $0x108] sm:$0xff] %v579
        %1314 = vst [vmem:[%s215 + $0x110] sm:$0xff] %v581
        %1315 = vst [vmem:[%s215 + $0x118] sm:$0xff] %v1017
        %1316 = vst [vmem:[%s215 + $0x120] sm:$0xff] %v585
        %1317 = vst [vmem:[%s215 + $0x128] sm:$0xff] %v587
        %1318 = vst [vmem:[%s215 + $0x130] sm:$0xff] %v1022
        %1319 = vst [vmem:[%s215 + $0x138] sm:$0xff] %v591
        %1320 = vst [vmem:[%s215 + $0x140] sm:$0xff] %v593
        %1321 = vst [vmem:[%s215 + $0x148] sm:$0xff] %v1027
        %1322 = vst [vmem:[%s215 + $0x150] sm:$0xff] %v597
        %1323 = vst [vmem:[%s215 + $0x158] sm:$0xff] %v599
        %1324 = vst [vmem:[%s215 + $0x160] sm:$0xff] %v1032
        %1325 = vst [vmem:[%s215 + $0x168] sm:$0xff] %v603
        %1326 = vst [vmem:[%s215 + $0x170] sm:$0xff] %v605
        %1327 = vst [vmem:[%s215 + $0x178] sm:$0xff] %v1037
        %1328 = vst [vmem:[%s215 + $0x180] sm:$0xff] %v609
        %1329 = vst [vmem:[%s215 + $0x188] sm:$0xff] %v611
        %1330 = vst [vmem:[%s215 + $0x190] sm:$0xff] %v1042
        %1331 = vst [vmem:[%s215 + $0x198] sm:$0xff] %v615
        %1332 = vst [vmem:[%s215 + $0x1a0] sm:$0xff] %v617
        %1333 = vst [vmem:[%s215 + $0x1a8] sm:$0xff] %v1047
        %1334 = vst [vmem:[%s215 + $0x1b0] sm:$0xff] %v621
        %1335 = vst [vmem:[%s215 + $0x1b8] sm:$0xff] %v623
        %1336 = vst [vmem:[%s215 + $0x1c0] sm:$0xff] %v1052
        %1337 = vst [vmem:[%s215 + $0x1c8] sm:$0xff] %v627
        %1338 = vst [vmem:[%s215 + $0x1d0] sm:$0xff] %v629
        %1339 = vst [vmem:[%s215 + $0x1d8] sm:$0xff] %v1057
        %1340 = vst [vmem:[%s215 + $0x1e0] sm:$0xff] %v633
        %1341 = vst [vmem:[%s215 + $0x1e8] sm:$0xff] %v635
        %1342 = vst [vmem:[%s215 + $0x1f0] sm:$0xff] %v1062
        %1343 = vst [vmem:[%s215 + $0x1f8] sm:$0xff] %v639
        %1344 = vst [vmem:[%s215 + $0x200] sm:$0xff] %v641
        %1345 = vst [vmem:[%s215 + $0x208] sm:$0xff] %v1067
        %1346 = vst [vmem:[%s215 + $0x210] sm:$0xff] %v645
        %1347 = vst [vmem:[%s215 + $0x218] sm:$0xff] %v647
        %1348 = vst [vmem:[%s215 + $0x220] sm:$0xff] %v1072
        %1349 = vst [vmem:[%s215 + $0x228] sm:$0xff] %v651
        %1350 = vst [vmem:[%s215 + $0x230] sm:$0xff] %v653
        %1351 = vst [vmem:[%s215 + $0x238] sm:$0xff] %v1077
        %1352 = vst [vmem:[%s215 + $0x240] sm:$0xff] %v657
        %1353 = vst [vmem:[%s215 + $0x248] sm:$0xff] %v659
        %1354 = vst [vmem:[%s215 + $0x250] sm:$0xff] %v1082
        %1355 = vst [vmem:[%s215 + $0x258] sm:$0xff] %v663
        %1356 = vst [vmem:[%s215 + $0x260] sm:$0xff] %v665
        %1357 = vst [vmem:[%s215 + $0x268] sm:$0xff] %v1087
        %1358 = vst [vmem:[%s215 + $0x270] sm:$0xff] %v669
        %1359 = vst [vmem:[%s215 + $0x278] sm:$0xff] %v671
        %1360 = vst [vmem:[%s215 + $0x280] sm:$0xff] %v1092
        %1361 = vst [vmem:[%s215 + $0x288] sm:$0xff] %v675
        %1362 = vst [vmem:[%s215 + $0x290] sm:$0xff] %v677
        %1363 = vst [vmem:[%s215 + $0x298] sm:$0xff] %v1097
        %1364 = vst [vmem:[%s215 + $0x2a0] sm:$0xff] %v681
        %1365 = vst [vmem:[%s215 + $0x2a8] sm:$0xff] %v683
        %1366 = vst [vmem:[%s215 + $0x2b0] sm:$0xff] %v1102
        %1367 = vst [vmem:[%s215 + $0x2b8] sm:$0xff] %v687
        %1368 = vst [vmem:[%s215 + $0x2c0] sm:$0xff] %v689
        %1369 = vst [vmem:[%s215 + $0x2c8] sm:$0xff] %v1107
        %1370 = vst [vmem:[%s215 + $0x2d0] sm:$0xff] %v693
        %1371 = vst [vmem:[%s215 + $0x2d8] sm:$0xff] %v695
        %1372 = vst [vmem:[%s215 + $0x2e0] sm:$0xff] %v1112
        %1373 = vst [vmem:[%s215 + $0x2e8] sm:$0xff] %v699
        %1374 = vst [vmem:[%s215 + $0x2f0] sm:$0xff] %v701
        %1375 = vst [vmem:[%s215 + $0x2f8] sm:$0xff] %v1117
        %1376 = vst [vmem:[%s215 + $0x300] sm:$0xff] %v705
        %1377 = vst [vmem:[%s215 + $0x308] sm:$0xff] %v707
        %1378 = vst [vmem:[%s215 + $0x310] sm:$0xff] %v1122
        %1379 = vst [vmem:[%s215 + $0x318] sm:$0xff] %v711
        %1380 = vst [vmem:[%s215 + $0x320] sm:$0xff] %v713
        %1381 = vst [vmem:[%s215 + $0x328] sm:$0xff] %v1127
        %1382 = vst [vmem:[%s215 + $0x330] sm:$0xff] %v717
        %1383 = vst [vmem:[%s215 + $0x338] sm:$0xff] %v719
        %1384 = vst [vmem:[%s215 + $0x340] sm:$0xff] %v1132
        %1385 = vst [vmem:[%s215 + $0x348] sm:$0xff] %v723
        %1386 = vst [vmem:[%s215 + $0x350] sm:$0xff] %v725
        %1387 = vst [vmem:[%s215 + $0x358] sm:$0xff] %v1137
        %1388 = vst [vmem:[%s215 + $0x360] sm:$0xff] %v729
        %1389 = vst [vmem:[%s215 + $0x368] sm:$0xff] %v731
        %1390 = vst [vmem:[%s215 + $0x370] sm:$0xff] %v1142
        %1391 = vst [vmem:[%s215 + $0x378] sm:$0xff] %v735
        %1392 = vst [vmem:[%s215 + $0x380] sm:$0xff] %v737
        %1393 = vst [vmem:[%s215 + $0x388] sm:$0xff] %v1147
        %1394 = vst [vmem:[%s215 + $0x390] sm:$0xff] %v741
        %1395 = vst [vmem:[%s215 + $0x398] sm:$0xff] %v743
        %1396 = vst [vmem:[%s215 + $0x3a0] sm:$0xff] %v1152
        %1397 = vst [vmem:[%s215 + $0x3a8] sm:$0xff] %v747
        %1398 = vst [vmem:[%s215 + $0x3b0] sm:$0xff] %v749
        %1399 = vst [vmem:[%s215 + $0x3b8] sm:$0xff] %v1157
        %1400 = vst [vmem:[%s215 + $0x3c0] sm:$0xff] %v753
        %1401 = vst [vmem:[%s215 + $0x3c8] sm:$0xff] %v755
        %1402 = vst [vmem:[%s215 + $0x3d0] sm:$0xff] %v1162
        %1403 = vst [vmem:[%s215 + $0x3d8] sm:$0xff] %v759
        %1404 = vst [vmem:[%s215 + $0x3e0] sm:$0xff] %v761
        %1405 = vst [vmem:[%s215 + $0x3e8] sm:$0xff] %v1167
        %1406 = vst [vmem:[%s215 + $0x3f0] sm:$0xff] %v765
        %1407 = vst [vmem:[%s215 + $0x3f8] sm:$0xff] %v767
        %1408 = vst [vmem:[%s215 + $0x400] sm:$0xff] %v1172
        %1409 = vst [vmem:[%s215 + $0x408] sm:$0xff] %v771
        %1410 = vst [vmem:[%s215 + $0x410] sm:$0xff] %v773
        %1411 = vst [vmem:[%s215 + $0x418] sm:$0xff] %v1177
        %1412 = vst [vmem:[%s215 + $0x420] sm:$0xff] %v777
        %1413 = vst [vmem:[%s215 + $0x428] sm:$0xff] %v779
        %1414 = vst [vmem:[%s215 + $0x430] sm:$0xff] %v1182
        %1415 = vst [vmem:[%s215 + $0x438] sm:$0xff] %v783
        %1416 = vst [vmem:[%s215 + $0x440] sm:$0xff] %v785
        %1417 = vst [vmem:[%s215 + $0x448] sm:$0xff] %v1187
        %1418 = vst [vmem:[%s215 + $0x450] sm:$0xff] %v789
        %1419 = vst [vmem:[%s215 + $0x458] sm:$0xff] %v791
        %1420 = vst [vmem:[%s215 + $0x460] sm:$0xff] %v1192
        %1421 = vst [vmem:[%s215 + $0x468] sm:$0xff] %v795
        %1422 = vst [vmem:[%s215 + $0x470] sm:$0xff] %v797
        %1423 = vst [vmem:[%s215 + $0x478] sm:$0xff] %v1197
        %1424 = vst [vmem:[%s215 + $0x480] sm:$0xff] %v801
        %1425 = vst [vmem:[%s215 + $0x488] sm:$0xff] %v803
        %1426 = vst [vmem:[%s215 + $0x490] sm:$0xff] %v1202
        %1427 = vst [vmem:[%s215 + $0x498] sm:$0xff] %v807
        %1428 = vst [vmem:[%s215 + $0x4a0] sm:$0xff] %v809
        %1429 = vst [vmem:[%s215 + $0x4a8] sm:$0xff] %v1207
        %1430 = vst [vmem:[%s215 + $0x4b0] sm:$0xff] %v813
        %1431 = vst [vmem:[%s215 + $0x4b8] sm:$0xff] %v815
        %1432 = vst [vmem:[%s215 + $0x4c0] sm:$0xff] %v1212
        %1433 = vst [vmem:[%s215 + $0x4c8] sm:$0xff] %v819
        %1434 = vst [vmem:[%s215 + $0x4d0] sm:$0xff] %v821
        %1435 = vst [vmem:[%s215 + $0x4d8] sm:$0xff] %v1217
        %1436 = vst [vmem:[%s215 + $0x4e0] sm:$0xff] %v825
        %1437 = vst [vmem:[%s215 + $0x4e8] sm:$0xff] %v827
        %1438 = vst [vmem:[%s215 + $0x4f0] sm:$0xff] %v1222
        %1439 = vst [vmem:[%s215 + $0x4f8] sm:$0xff] %v831
        %1440 = vst [vmem:[%s215 + $0x500] sm:$0xff] %v833
        %1441 = vst [vmem:[%s215 + $0x508] sm:$0xff] %v1227
        %1442 = vst [vmem:[%s215 + $0x510] sm:$0xff] %v837
        %1443 = vst [vmem:[%s215 + $0x518] sm:$0xff] %v839
        %1444 = vst [vmem:[%s215 + $0x520] sm:$0xff] %v1232
        %1445 = vst [vmem:[%s215 + $0x528] sm:$0xff] %v843
        %1446 = vst [vmem:[%s215 + $0x530] sm:$0xff] %v845
        %1447 = vst [vmem:[%s215 + $0x538] sm:$0xff] %v1237
        %1448 = vst [vmem:[%s215 + $0x540] sm:$0xff] %v849
        %1449 = vst [vmem:[%s215 + $0x548] sm:$0xff] %v851
        %1450 = vst [vmem:[%s215 + $0x550] sm:$0xff] %v1242
        %1451 = vst [vmem:[%s215 + $0x558] sm:$0xff] %v855
        %1452 = vst [vmem:[%s215 + $0x560] sm:$0xff] %v857
        %1453 = vst [vmem:[%s215 + $0x568] sm:$0xff] %v1247
        %1454 = vst [vmem:[%s215 + $0x570] sm:$0xff] %v861
        %1455 = vst [vmem:[%s215 + $0x578] sm:$0xff] %v863
        %1456 = vst [vmem:[%s215 + $0x580] sm:$0xff] %v1252
        %1457 = vst [vmem:[%s215 + $0x588] sm:$0xff] %v867
        %1458 = vst [vmem:[%s215 + $0x590] sm:$0xff] %v869
        %1459 = vst [vmem:[%s215 + $0x598] sm:$0xff] %v1257
        %1460 = vst [vmem:[%s215 + $0x5a0] sm:$0xff] %v873
        %1461 = vst [vmem:[%s215 + $0x5a8] sm:$0xff] %v875
        %1462 = vst [vmem:[%s215 + $0x5b0] sm:$0xff] %v1262
        %1463 = vst [vmem:[%s215 + $0x5b8] sm:$0xff] %v879
        %1464 = vst [vmem:[%s215 + $0x5c0] sm:$0xff] %v881
        %1465 = vst [vmem:[%s215 + $0x5c8] sm:$0xff] %v1267
        %1466 = vst [vmem:[%s215 + $0x5d0] sm:$0xff] %v885
        %1467 = vst [vmem:[%s215 + $0x5d8] sm:$0xff] %v887
        %1468 = vst [vmem:[%s215 + $0x5e0] sm:$0xff] %v1272
        %1469 = vst [vmem:[%s215 + $0x5e8] sm:$0xff] %v891
        %1470 = vst [vmem:[%s215 + $0x5f0] sm:$0xff] %v893
        %1471 = vst [vmem:[%s215 + $0x5f8] sm:$0xff] %v1277
        %s1472 = sand.u32 %s105, 1
        %s1473 = scalar_lea.sflag [#allocation4], %s1472
        %s1474 = sand.u32 %s105, 1
        %s1475 = smul.addr %s1474, 1536
        %s1476 = scalar_lea.vmem [#allocation7], %s1475
        // Predicated region
        $region37: #{tpu_custom_call.1} parent=27 // pred_check
          %p1477 = pneg %p115
        $region38: #{tpu_custom_call.1} parent=27 // pred_check_branch
          %1479 = sbr.rel (%p1477) target = $region40
        $region39: #{tpu_custom_call.1} parent=27 // pred_region
          %s1480 = smul.u32 64, %s25
          %s1481 = smul.u32 3, %s26
          %s1483 = ssub.s32 24576, 24576
          %1484 = vsyncadd %s1473, %s1483
          %s1485 = smul.addr %s1480, 6
          %s1486 = sadd.s32 %s1481, %s1485
          %s1487 = smul.addr %s1486, 128
          %s1488 = scalar_lea.hbm %s2, %s1487
          %s1489 = sshll.u32 %s1476, 4
          %s1490 = int_to_ptr.vmem [resolvable:$true] %s1489
          %1495 = dma.vmem_to_hbm [thread:$0]  %s1490, 24576, %s1488, %s1473, 384, 768, 24
        $region40: #{tpu_custom_call.1} parent=27 // pred_fallthru
          _
      $region28: #{tpu_custom_call.1} parent=5 // pred_fallthru
        _
      %p1496 = scmp.le.s32.totalorder 2, %s15
      // Predicated region
      $region41: #{tpu_custom_call.1} parent=5 // pred_check
        %p1497 = pneg %p1496
      $region42: #{tpu_custom_call.1} parent=5 // pred_check_branch
        %1499 = sbr.rel (%p1497) target = $region44
      $region43: #{tpu_custom_call.1} parent=5 // pred_region
        %s1500 = ssub.s32 %s15, 2
        // Predicated region
        $region45: #{tpu_custom_call.1} parent=43 // pred_check
          %p1501 = pneg %p121
        $region46: #{tpu_custom_call.1} parent=43 // pred_check_branch
          %1503 = sbr.rel (%p1501) target = $region48
        $region47: #{tpu_custom_call.1} parent=43 // pred_region
          %s1504 = sand.u32 %s106, 1
          %s1505 = scalar_lea.sflag [#allocation4], %s1504
          %s1506 = sand.u32 %s106, 1
          %s1507 = smul.addr %s1506, 1536
          %s1508 = scalar_lea.vmem [#allocation7], %s1507
          %1509 = dma.done %s1505, 24576
        $region48: #{tpu_custom_call.1} parent=43 // pred_fallthru
          _
      $region44: #{tpu_custom_call.1} parent=5 // pred_fallthru
        _
    $region6: #{tpu_custom_call.1} parent=1 // loop_footer
      %s19 = sadd.s32 1, %s15
    $region7: #{tpu_custom_call.1} parent=1 // loop_footer_branch
      %14 = sbr.rel target = $region3
    $region8: #{tpu_custom_call.1} parent=1 // loop_exit
      _
    %1510 = vsyncpa [#allocation3], 1
    %s1511 = scalar_lea.sflag [#allocation3], 1
    %1512 = vsyncpa %s1511, 1
    %1513 = vsyncpa [#allocation6], 1
    %s1514 = scalar_lea.sflag [#allocation6], 1
    %1515 = vsyncpa %s1514, 1
    %1516 = vsyncpa [#allocation4], 1
    %s1517 = scalar_lea.sflag [#allocation4], 1
    %1518 = vsyncpa %s1517, 1

</llo_original>
